<compile_context>
chip_gen: v7x
topology: tpu7x:2x2x1
jax: 0.10.0
libtpu: 0.0.40
codegen_flags: <defaults>
</compile_context>

<pallas_src>
import functools

import jax
import jax.numpy as jnp
import numpy as np
from jax.experimental import pallas as pl
from jax.experimental.pallas import tpu as pltpu


def _leaky(t):
    return jnp.where(t > 0, t, 0.1 * t)          # LeakyReLU(0.1), f32 VPU math


# ----------------------------------------------------------------------------
# Channel-first tile compute, shared by the Pallas kernel and the pure-JAX
# reference.  Columns (rows of points) are fully independent, so tiling the
# row/lane axis across grid steps is exact.
#
#   np_b  : [S, Cin, R] bf16   grouped features + direction  (nsample-major)
#   p1g16 : [C, R]      bf16   point1_graph (hoisted graph conv output)
#   p1t16 : [C, R]      bf16   points1
#   w_np  : [3C, Cin]   bf16   rows = [wq0 ; wk0 ; wfv1]
#   w_cc  : [9C, C]     bf16   rows = [wfq; wfk; wq1a; wq1b; wk1a; wk1b;
#                                      wfv2; wv0; wv1]
#   b_all : [8C, 1]     f32    rows = [bq0; bk0; bq1a; bq1b; bk1a; bk1b;
#                                      bv0; bv1]
# ----------------------------------------------------------------------------
def _gat_compute(np_b, p1g16, p1t16, w_np, w_cc, b_all):
    S = np_b.shape[0]
    C = p1g16.shape[0]
    f32, bf16 = jnp.float32, jnp.bfloat16

    def wslab(i):                                  # i-th [C, C] weight block
        return w_cc[i * C:(i + 1) * C, :]

    def bslab(i):                                  # i-th [C, 1] bias block
        return b_all[i * C:(i + 1) * C, :]

    def dot2(w, x, b=None):                        # [Co,Ci] @ [Ci,R] -> [Co,R]
        y = jax.lax.dot_general(w, x, (((1,), (0,)), ((), ())),
                                preferred_element_type=f32)
        return y if b is None else y + b

    def bdot(w, x, b=None):                        # [Co,Ci] @ [S,Ci,R] -> [S,Co,R]
        wb = jnp.broadcast_to(w, (S,) + w.shape)   # tiny weight, hoisted once
        y = jax.lax.dot_general(wb, x, (((2,), (1,)), ((0,), (0,))),
                                preferred_element_type=f32)
        return y if b is None else y + b[None]

    p1g = p1g16.astype(f32)
    p1t = p1t16.astype(f32)

    # Fused Cin contraction: mlp_q_convs[0] | mlp_k_convs[0] | fuse_v1.
    # NOTE: the sublane split below is tile-aligned because C % 8 == 0.
    qkv = bdot(w_np, np_b)                         # [S, 3C, R] f32
    q0 = qkv[:, 0 * C:1 * C, :] + bslab(0)[None]
    k0 = qkv[:, 1 * C:2 * C, :] + bslab(1)[None]
    v0 = qkv[:, 2 * C:3 * C, :]                    # fuse_v1 (bias-free)

    # Fused point1_graph contraction: fuse_q | fuse_k.
    pg = dot2(w_cc[0:2 * C, :], p1g16)             # [2C, R]
    p1g_q, p1g_k = pg[0:C, :], pg[C:2 * C, :]

    # ---- q branch -----------------------------------------------------------
    q = _leaky(q0 + p1g_q[None]).astype(bf16)      # [S, C, R]
    q1 = bdot(wslab(2), q, bslab(2))               # first half  of mlp_q_convs[1]
    q2 = bdot(wslab(3), q, bslab(3))               # second half of mlp_q_convs[1]

    # ---- k branch (max over nsample before the last conv) --------------------
    k = jnp.max(_leaky(k0 + p1g_k[None]), axis=0).astype(bf16)   # [C, R]
    k1 = dot2(wslab(4), k, bslab(4))               # halves of mlp_k_convs[1]
    k2 = dot2(wslab(5), k, bslab(5))

    # gates: chunk(sigmoid(k*q), 2, dim=channel) == per-half sigmoid(k_h*q_h)
    g1 = jax.nn.sigmoid(k1[None] * q1)             # [S, C, R]
    g2 = jax.nn.sigmoid(k2[None] * q2)

    # ---- v branch -----------------------------------------------------------
    p1_expand = bdot(wslab(6), (g2 * p1g[None]).astype(bf16))    # fuse_v2
    v = _leaky(v0 * g1 + p1_expand) + p1t[None]    # + points1 expand
    v_res = jnp.mean(v, axis=0)                    # v.mean(nsample)  [C, R]

    v = bdot(wslab(7), v.astype(bf16), bslab(6))   # mlp_v_convs[0]
    v = jnp.max(_leaky(v * g1 + p1_expand), axis=0)            # max over nsample
    v = _leaky(dot2(wslab(8), v.astype(bf16), bslab(7)))       # mlp_v_convs[1]

    return v + v_res                               # [C, R] f32


def _gat_gcn_kernel(np_ref, p1g_ref, p1t_ref, w_np_ref, w_cc_ref, b_ref,
                    out_ref):
    out = _gat_compute(np_ref[...], p1g_ref[...], p1t_ref[...],
                       w_np_ref[...], w_cc_ref[...], b_ref[...])
    out_ref[...] = out.astype(out_ref.dtype)


# ----------------------------------------------------------------------------
# VMEM-budget-driven row-tile picker (rows = lanes, so tiles are 128-multiples).
# ----------------------------------------------------------------------------
def _pick_row_tile(n_rows, S, Cin, C):
    # Live bytes per row (column of every tile), counting double-buffered
    # pipeline blocks and all simultaneously-live f32 intermediates.
    per_row = (2 * S * Cin * 2          # np block, bf16, double-buffered
               + 2 * 2 * C * 2          # p1g + p1t blocks, bf16, double-buffered
               + 2 * C * 4              # out block, f32, double-buffered
               + 12 * S * C * 4         # f32 intermediates (qkv, q1/q2, g1/g2,
                                        #  v0, p1_expand, v, transients)
               + 2 * S * C * 2)         # bf16 casts feeding the MXU
    try:
        vmem_cap = int(pltpu.get_tpu_info().vmem_capacity_bytes)
    except Exception:
        vmem_cap = 64 * 1024 * 1024     # conservative fallback (v7x per-core)

    budget = int(vmem_cap * 0.40)       # ~26 MiB on v7x, ~51 MiB on v5e/v6e
    r_budget = max(128, (budget // per_row) // 128 * 128)

    n_pad128 = -(-n_rows // 128) * 128
    # Keep at least two grid steps when there is enough work (pipelining + the
    # second TensorCore on v7x); a single padded tile is unavoidable otherwise.
    if n_pad128 >= 256:
        r_cap = max(128, (n_pad128 // 2) // 128 * 128)
    else:
        r_cap = n_pad128
    row_tile = min(r_budget, r_cap)

    vmem_limit = int(min(vmem_cap * 3 // 4,
                         max(per_row * row_tile * 5 // 4 + (4 << 20),
                             32 << 20)))
    return row_tile, vmem_limit


def _pallas_call_gat(np3, p1g, p1t, w_np, w_cc, b_all, *, row_tile, vmem_limit):
    S, Cin, n_pad = np3.shape
    C = p1g.shape[0]
    R = row_tile
    steps = n_pad // R

    macs_per_row = 3 * S * C * Cin + 4 * S * C * C + 5 * C * C
    flops = 2 * n_pad * macs_per_row
    transcendentals = 2 * S * C * n_pad                 # the two sigmoids
    bytes_accessed = (np3.size * 2 + p1g.size * 2 + p1t.size * 2
                      + n_pad * C * 4
                      + w_np.size * 2 + w_cc.size * 2 + b_all.size * 4)

    return pl.pallas_call(
        _gat_gcn_kernel,
        out_shape=jax.ShapeDtypeStruct((C, n_pad), jnp.float32),
        grid=(steps,),
        in_specs=[
            pl.BlockSpec((S, Cin, R), lambda i: (0, 0, i)),
            pl.BlockSpec((C, R), lambda i: (0, i)),
            pl.BlockSpec((C, R), lambda i: (0, i)),
            pl.BlockSpec(w_np.shape, lambda i: (0, 0)),   # resident weights
            pl.BlockSpec(w_cc.shape, lambda i: (0, 0)),
            pl.BlockSpec(b_all.shape, lambda i: (0, 0)),
        ],
        out_specs=pl.BlockSpec((C, R), lambda i: (0, i)),
        compiler_params=pltpu.CompilerParams(
            dimension_semantics=("parallel",),
            vmem_limit_bytes=int(vmem_limit)),
        cost_estimate=pl.CostEstimate(
            flops=int(flops), transcendentals=int(transcendentals),
            bytes_accessed=int(bytes_accessed)),
    )(np3, p1g, p1t, w_np, w_cc, b_all)


# ----------------------------------------------------------------------------
# XLA glue: kNN grouping, hoisted graph conv, channel-first layout, packing.
# ----------------------------------------------------------------------------
def _prepare(xyz1, xyz2, points1, points2, params, nsample):
    B, _, N1 = xyz1.shape
    C = points1.shape[1]
    S = nsample
    f32, bf16 = jnp.float32, jnp.bfloat16

    # TODO(synk): kNN top-k + data-dependent neighbor gather stay in XLA glue;
    # fusing them would need scalar-prefetched indices + manual DMA gather.
    x1 = jnp.transpose(xyz1, (0, 2, 1))          # [B, N1, 3]
    x2 = jnp.transpose(xyz2, (0, 2, 1))          # [B, N2, 3]
    p2 = jnp.transpose(points2, (0, 2, 1))       # [B, N2, D2]
    sq = (jnp.sum(x1 ** 2, -1)[:, :, None]
          + jnp.sum(x2 ** 2, -1)[:, None, :]
          - 2.0 * jnp.einsum('bnc,bmc->bnm', x1, x2))
    _, idx = jax.lax.top_k(-sq, S)                              # smallest dists
    gather = jax.vmap(lambda src, i: src[i])
    nb_xyz = gather(x2, idx)                                    # [B, N1, S, 3]
    grp_p2 = gather(p2, idx)                                    # [B, N1, S, D2]
    direction = nb_xyz - x1[:, :, None, :]
    new_points = jnp.concatenate([grp_p2, direction], -1)      # [B, N1, S, Cin]
    Cin = new_points.shape[-1]

    # Kernel layout: nsample-major, channels on sublanes, rows b*N1+n on lanes.
    np3 = jnp.transpose(new_points, (2, 3, 0, 1)).reshape(S, Cin, B * N1)
    np3 = np3.astype(bf16)

    # Hoisted graph conv: point1_graph = leaky(graph_w(points1 @ graph_a)).
    p1_bn1c = jnp.transpose(points1, (0, 2, 1))                 # [B, N1, C]
    pg = jnp.einsum('bnc,nmc->bmc', p1_bn1c, params['gaT'])     # graph_a contraction
    p1g = _leaky(jnp.einsum('bmc,dc->bmd', pg, params['wg']) + params['bg'])
    p1g_cf = jnp.transpose(p1g, (2, 0, 1)).reshape(C, B * N1).astype(bf16)
    p1t_cf = jnp.transpose(points1, (1, 0, 2)).reshape(C, B * N1).astype(bf16)

    # Pack the 16 weight/bias arrays into 3 resident kernel inputs.
    w_np = jnp.concatenate(
        [params['wq0'], params['wk0'], params['wfv1']], 0).astype(bf16)
    wq1, wk1 = params['wq1'], params['wk1']
    w_cc = jnp.concatenate(
        [params['wfq'], params['wfk'],
         wq1[:C], wq1[C:], wk1[:C], wk1[C:],
         params['wfv2'], params['wv0'], params['wv1']], 0).astype(bf16)
    bq1, bk1 = params['bq1'], params['bk1']
    b_all = jnp.concatenate(
        [params['bq0'], params['bk0'],
         bq1[:C], bq1[C:], bk1[:C], bk1[C:],
         params['bv0'], params['bv1']], 0).reshape(-1, 1).astype(f32)

    return np3, p1g_cf, p1t_cf, w_np, w_cc, b_all, (B, N1, C, S, Cin)


def gat_gcn_forward(xyz1, xyz2, points1, points2, params, nsample):
    np3, p1g, p1t, w_np, w_cc, b_all, (B, N1, C, S, Cin) = _prepare(
        xyz1, xyz2, points1, points2, params, nsample)
    n_rows = B * N1
    row_tile, vmem_limit = _pick_row_tile(n_rows, S, Cin, C)
    n_pad = -(-n_rows // row_tile) * row_tile
    pad = n_pad - n_rows
    if pad:                                   # zero-pad rows -> finite garbage,
        np3 = jnp.pad(np3, ((0, 0), (0, 0), (0, pad)))     # sliced off below
        p1g = jnp.pad(p1g, ((0, 0), (0, pad)))
        p1t = jnp.pad(p1t, ((0, 0), (0, pad)))
    out = _pallas_call_gat(np3, p1g, p1t, w_np, w_cc, b_all,
                           row_tile=row_tile, vmem_limit=vmem_limit)
    out = out[:, :n_rows]                                      # drop padding
    return jnp.transpose(out.reshape(C, B, N1), (1, 0, 2))     # [B, C, N1]


def gat_gcn_reference(xyz1, xyz2, points1, points2, params, nsample):
    # Same math in plain XLA on un-padded, un-tiled inputs: validates the
    # Pallas lowering, padding and tiling (not PyTorch numerics).
    np3, p1g, p1t, w_np, w_cc, b_all, (B, N1, C, _, _) = _prepare(
        xyz1, xyz2, points1, points2, params, nsample)
    out = _gat_compute(np3, p1g, p1t, w_np, w_cc, b_all)
    return jnp.transpose(out.reshape(C, B, N1), (1, 0, 2))


# ----------------------------------------------------------------------------
# Deterministic parameter init (shapes per GAT_GCN.__init__); conv 1x1 weights
# are stored as [out, in], biases as [out].
# ----------------------------------------------------------------------------
def init_params(key, in_channel, latent_channel, graph_width, mlp):
    assert len(mlp) == 2 and mlp[0] == mlp[1] == latent_channel
    C = latent_channel
    Cin = in_channel + 3
    N1 = graph_width
    keys = iter(jax.random.split(key, 32))
    f32 = jnp.float32

    def wmat(cout, cin):
        return jax.random.normal(next(keys), (cout, cin), f32) / np.sqrt(cin)

    def bias(cout):
        return jax.random.normal(next(keys), (cout,), f32) * 0.1

    graph_a = jax.random.normal(next(keys), (C, N1, N1), f32)   # [1,C,gw,gw]
    return dict(
        gaT=jnp.transpose(graph_a, (1, 2, 0)),      # [n, m, C]
        wg=wmat(C, C), bg=bias(C),                  # graph_w Conv1d(C,C,1,bias)
        wfq=wmat(C, C), wfk=wmat(C, C),             # fuse_q / fuse_k (no bias)
        wfv1=wmat(C, Cin), wfv2=wmat(C, C),         # fuse_v1 / fuse_v2 (no bias)
        wq0=wmat(C, Cin), bq0=bias(C),              # mlp_q_convs[0]
        wq1=wmat(2 * C, C), bq1=bias(2 * C),        # mlp_q_convs[1] -> 2*mlp[-1]
        wk0=wmat(C, Cin), bk0=bias(C),              # mlp_k_convs[0]
        wk1=wmat(2 * C, C), bk1=bias(2 * C),        # mlp_k_convs[1]
        wv0=wmat(C, C), bv0=bias(C),                # mlp_v_convs[0]
        wv1=wmat(C, C), bv1=bias(C),                # mlp_v_convs[1]
    )


if __name__ == "__main__":
    B, N1, N2 = 2, 8, 32
    nsample = 4
    in_channel = 16                 # D2
    latent_channel = 8              # C = D1 = mlp[0] = mlp[-1]
    graph_width = N1
    mlp = (latent_channel, latent_channel)

    key = jax.random.PRNGKey(0)
    k_in, k_par = jax.random.split(key)
    kx1, kx2, kp1, kp2 = jax.random.split(k_in, 4)
    xyz1 = jax.random.normal(kx1, (B, 3, N1), jnp.float32)
    xyz2 = jax.random.normal(kx2, (B, 3, N2), jnp.float32)
    points1 = jax.random.normal(kp1, (B, latent_channel, N1), jnp.float32)
    points2 = jax.random.normal(kp2, (B, in_channel, N2), jnp.float32)

    params = init_params(k_par, in_channel, latent_channel, graph_width, mlp)

    fwd = jax.jit(functools.partial(gat_gcn_forward, nsample=nsample))
    out = jax.block_until_ready(fwd(xyz1, xyz2, points1, points2, params))

    ref = jax.block_until_ready(
        gat_gcn_reference(xyz1, xyz2, points1, points2, params, nsample))

    assert out.shape == (B, latent_channel, N1), out.shape
    assert np.all(np.isfinite(np.asarray(out)))
    np.testing.assert_allclose(np.asarray(out), np.asarray(ref),
                               rtol=2e-2, atol=2e-2)
    print("KERNEL_OK")
</pallas_src>

<mosaic_0001>
module attributes {stable_mosaic.version = 11 : i64} {
  func.func @_gat_gcn_kernel(%arg0: i32, %arg1: memref<4x19x128xbf16, #tpu.memory_space<vmem>>, %arg2: memref<8x128xbf16, #tpu.memory_space<vmem>>, %arg3: memref<8x128xbf16, #tpu.memory_space<vmem>>, %arg4: memref<24x19xbf16, #tpu.memory_space<vmem>>, %arg5: memref<72x8xbf16, #tpu.memory_space<vmem>>, %arg6: memref<64x1xf32, #tpu.memory_space<vmem>>, %arg7: memref<8x128xf32, #tpu.memory_space<vmem>>) attributes {dimension_semantics = [#tpu.dimension_semantics<parallel>], iteration_bounds = array<i64: 1>, scalar_prefetch = 0 : i64, scratch_operands = 0 : i64, tpu.core_type = #tpu.core_type<tc>, window_params = [{transform_indices = @transform_0, window_bounds = array<i64: 4, 19, 128>}, {transform_indices = @transform_1, window_bounds = array<i64: 8, 128>}, {transform_indices = @transform_2, window_bounds = array<i64: 8, 128>}, {pipeline_mode = #tpu.pipeline_mode<synchronous>, transform_indices = @transform_3, window_bounds = array<i64: 24, 19>}, {pipeline_mode = #tpu.pipeline_mode<synchronous>, transform_indices = @transform_4, window_bounds = array<i64: 72, 8>}, {pipeline_mode = #tpu.pipeline_mode<synchronous>, transform_indices = @transform_5, window_bounds = array<i64: 64, 1>}, {transform_indices = @transform_6, window_bounds = array<i64: 8, 128>}]} {
    %c0 = arith.constant 0 : index
    %c0_0 = arith.constant 0 : index
    %c0_1 = arith.constant 0 : index
    %0 = vector.load %arg1[%c0, %c0_0, %c0_1] : memref<4x19x128xbf16, #tpu.memory_space<vmem>>, vector<4x19x128xbf16>
    %c0_2 = arith.constant 0 : index
    %c0_3 = arith.constant 0 : index
    %1 = vector.load %arg2[%c0_2, %c0_3] : memref<8x128xbf16, #tpu.memory_space<vmem>>, vector<8x128xbf16>
    %c0_4 = arith.constant 0 : index
    %c0_5 = arith.constant 0 : index
    %2 = vector.load %arg3[%c0_4, %c0_5] : memref<8x128xbf16, #tpu.memory_space<vmem>>, vector<8x128xbf16>
    %c0_6 = arith.constant 0 : index
    %c0_7 = arith.constant 0 : index
    %3 = vector.load %arg4[%c0_6, %c0_7] : memref<24x19xbf16, #tpu.memory_space<vmem>>, vector<24x19xbf16>
    %c0_8 = arith.constant 0 : index
    %c0_9 = arith.constant 0 : index
    %4 = vector.load %arg5[%c0_8, %c0_9] : memref<72x8xbf16, #tpu.memory_space<vmem>>, vector<72x8xbf16>
    %c0_10 = arith.constant 0 : index
    %c0_11 = arith.constant 0 : index
    %5 = vector.load %arg6[%c0_10, %c0_11] : memref<64x1xf32, #tpu.memory_space<vmem>>, vector<64x1xf32>
    %6 = arith.extf %1 : vector<8x128xbf16> to vector<8x128xf32>
    %7 = arith.extf %2 : vector<8x128xbf16> to vector<8x128xf32>
    %8 = vector.shape_cast %3 : vector<24x19xbf16> to vector<1x24x19xbf16>
    %9 = vector.broadcast %8 : vector<1x24x19xbf16> to vector<4x24x19xbf16>
    %cst = arith.constant dense<0.000000e+00> : vector<4x24x128xf32>
    %10 = tpu.matmul %9, %0, %cst {dimension_numbers = #tpu.dot_dimension_numbers<[2], [1], [1], [2], [0, 0, 0, 1, 1, 2], [0], [0]>} : vector<4x24x19xbf16>, vector<4x19x128xbf16>, vector<4x24x128xf32> -> vector<4x24x128xf32>
    %11 = vector.extract_strided_slice %10 {offsets = [0, 0, 0], sizes = [4, 8, 128], strides = [1, 1, 1]} : vector<4x24x128xf32> to vector<4x8x128xf32>
    %12 = vector.extract_strided_slice %5 {offsets = [0, 0], sizes = [8, 1], strides = [1, 1]} : vector<64x1xf32> to vector<8x1xf32>
    %13 = vector.shape_cast %12 : vector<8x1xf32> to vector<1x8x1xf32>
    %14 = vector.broadcast %13 : vector<1x8x1xf32> to vector<4x8x128xf32>
    %15 = arith.addf %11, %14 : vector<4x8x128xf32>
    %16 = vector.extract_strided_slice %10 {offsets = [0, 8, 0], sizes = [4, 8, 128], strides = [1, 1, 1]} : vector<4x24x128xf32> to vector<4x8x128xf32>
    %17 = vector.extract_strided_slice %5 {offsets = [8, 0], sizes = [8, 1], strides = [1, 1]} : vector<64x1xf32> to vector<8x1xf32>
    %18 = vector.shape_cast %17 : vector<8x1xf32> to vector<1x8x1xf32>
    %19 = vector.broadcast %18 : vector<1x8x1xf32> to vector<4x8x128xf32>
    %20 = arith.addf %16, %19 : vector<4x8x128xf32>
    %21 = vector.extract_strided_slice %10 {offsets = [0, 16, 0], sizes = [4, 8, 128], strides = [1, 1, 1]} : vector<4x24x128xf32> to vector<4x8x128xf32>
    %22 = vector.extract_strided_slice %4 {offsets = [0, 0], sizes = [16, 8], strides = [1, 1]} : vector<72x8xbf16> to vector<16x8xbf16>
    %cst_12 = arith.constant dense<0.000000e+00> : vector<16x128xf32>
    %23 = tpu.matmul %22, %1, %cst_12 {dimension_numbers = #tpu.dot_dimension_numbers<[1], [0], [0], [1], [0, 0, 1, 1], [], []>} : vector<16x8xbf16>, vector<8x128xbf16>, vector<16x128xf32> -> vector<16x128xf32>
    %24 = vector.extract_strided_slice %23 {offsets = [0, 0], sizes = [8, 128], strides = [1, 1]} : vector<16x128xf32> to vector<8x128xf32>
    %25 = vector.extract_strided_slice %23 {offsets = [8, 0], sizes = [8, 128], strides = [1, 1]} : vector<16x128xf32> to vector<8x128xf32>
    %26 = vector.shape_cast %24 : vector<8x128xf32> to vector<1x8x128xf32>
    %27 = vector.broadcast %26 : vector<1x8x128xf32> to vector<4x8x128xf32>
    %28 = arith.addf %15, %27 : vector<4x8x128xf32>
    %cst_13 = arith.constant 0.000000e+00 : f32
    %29 = vector.broadcast %cst_13 : f32 to vector<4x8x128xf32>
    %30 = arith.cmpf ogt, %28, %29 : vector<4x8x128xf32>
    %cst_14 = arith.constant 1.000000e-01 : f32
    %31 = vector.broadcast %cst_14 : f32 to vector<4x8x128xf32>
    %32 = arith.mulf %31, %28 : vector<4x8x128xf32>
    %33 = arith.select %30, %28, %32 : vector<4x8x128xi1>, vector<4x8x128xf32>
    %34 = arith.truncf %33 : vector<4x8x128xf32> to vector<4x8x128xbf16>
    %35 = vector.extract_strided_slice %4 {offsets = [16, 0], sizes = [8, 8], strides = [1, 1]} : vector<72x8xbf16> to vector<8x8xbf16>
    %36 = vector.extract_strided_slice %5 {offsets = [16, 0], sizes = [8, 1], strides = [1, 1]} : vector<64x1xf32> to vector<8x1xf32>
    %37 = vector.shape_cast %35 : vector<8x8xbf16> to vector<1x8x8xbf16>
    %38 = vector.broadcast %37 : vector<1x8x8xbf16> to vector<4x8x8xbf16>
    %cst_15 = arith.constant dense<0.000000e+00> : vector<4x8x128xf32>
    %39 = tpu.matmul %38, %34, %cst_15 {dimension_numbers = #tpu.dot_dimension_numbers<[2], [1], [1], [2], [0, 0, 0, 1, 1, 2], [0], [0]>} : vector<4x8x8xbf16>, vector<4x8x128xbf16>, vector<4x8x128xf32> -> vector<4x8x128xf32>
    %40 = vector.shape_cast %36 : vector<8x1xf32> to vector<1x8x1xf32>
    %41 = vector.broadcast %40 : vector<1x8x1xf32> to vector<4x8x128xf32>
    %42 = arith.addf %39, %41 : vector<4x8x128xf32>
    %43 = vector.extract_strided_slice %4 {offsets = [24, 0], sizes = [8, 8], strides = [1, 1]} : vector<72x8xbf16> to vector<8x8xbf16>
    %44 = vector.extract_strided_slice %5 {offsets = [24, 0], sizes = [8, 1], strides = [1, 1]} : vector<64x1xf32> to vector<8x1xf32>
    %45 = vector.shape_cast %43 : vector<8x8xbf16> to vector<1x8x8xbf16>
    %46 = vector.broadcast %45 : vector<1x8x8xbf16> to vector<4x8x8xbf16>
    %cst_16 = arith.constant dense<0.000000e+00> : vector<4x8x128xf32>
    %47 = tpu.matmul %46, %34, %cst_16 {dimension_numbers = #tpu.dot_dimension_numbers<[2], [1], [1], [2], [0, 0, 0, 1, 1, 2], [0], [0]>} : vector<4x8x8xbf16>, vector<4x8x128xbf16>, vector<4x8x128xf32> -> vector<4x8x128xf32>
    %48 = vector.shape_cast %44 : vector<8x1xf32> to vector<1x8x1xf32>
    %49 = vector.broadcast %48 : vector<1x8x1xf32> to vector<4x8x128xf32>
    %50 = arith.addf %47, %49 : vector<4x8x128xf32>
    %51 = vector.shape_cast %25 : vector<8x128xf32> to vector<1x8x128xf32>
    %52 = vector.broadcast %51 : vector<1x8x128xf32> to vector<4x8x128xf32>
    %53 = arith.addf %20, %52 : vector<4x8x128xf32>
    %cst_17 = arith.constant 0.000000e+00 : f32
    %54 = vector.broadcast %cst_17 : f32 to vector<4x8x128xf32>
    %55 = arith.cmpf ogt, %53, %54 : vector<4x8x128xf32>
    %cst_18 = arith.constant 1.000000e-01 : f32
    %56 = vector.broadcast %cst_18 : f32 to vector<4x8x128xf32>
    %57 = arith.mulf %56, %53 : vector<4x8x128xf32>
    %58 = arith.select %55, %53, %57 : vector<4x8x128xi1>, vector<4x8x128xf32>
    %cst_19 = arith.constant dense<0xFF800000> : vector<8x128xf32>
    %59 = vector.multi_reduction <maximumf>, %58, %cst_19 [0] : vector<4x8x128xf32> to vector<8x128xf32>
    %60 = arith.truncf %59 : vector<8x128xf32> to vector<8x128xbf16>
    %61 = vector.extract_strided_slice %4 {offsets = [32, 0], sizes = [8, 8], strides = [1, 1]} : vector<72x8xbf16> to vector<8x8xbf16>
    %62 = vector.extract_strided_slice %5 {offsets = [32, 0], sizes = [8, 1], strides = [1, 1]} : vector<64x1xf32> to vector<8x1xf32>
    %cst_20 = arith.constant dense<0.000000e+00> : vector<8x128xf32>
    %63 = tpu.matmul %61, %60, %cst_20 {dimension_numbers = #tpu.dot_dimension_numbers<[1], [0], [0], [1], [0, 0, 1, 1], [], []>} : vector<8x8xbf16>, vector<8x128xbf16>, vector<8x128xf32> -> vector<8x128xf32>
    %64 = vector.broadcast %62 : vector<8x1xf32> to vector<8x128xf32>
    %65 = arith.addf %63, %64 : vector<8x128xf32>
    %66 = vector.extract_strided_slice %4 {offsets = [40, 0], sizes = [8, 8], strides = [1, 1]} : vector<72x8xbf16> to vector<8x8xbf16>
    %67 = vector.extract_strided_slice %5 {offsets = [40, 0], sizes = [8, 1], strides = [1, 1]} : vector<64x1xf32> to vector<8x1xf32>
    %cst_21 = arith.constant dense<0.000000e+00> : vector<8x128xf32>
    %68 = tpu.matmul %66, %60, %cst_21 {dimension_numbers = #tpu.dot_dimension_numbers<[1], [0], [0], [1], [0, 0, 1, 1], [], []>} : vector<8x8xbf16>, vector<8x128xbf16>, vector<8x128xf32> -> vector<8x128xf32>
    %69 = vector.broadcast %67 : vector<8x1xf32> to vector<8x128xf32>
    %70 = arith.addf %68, %69 : vector<8x128xf32>
    %71 = vector.shape_cast %65 : vector<8x128xf32> to vector<1x8x128xf32>
    %72 = vector.broadcast %71 : vector<1x8x128xf32> to vector<4x8x128xf32>
    %73 = arith.mulf %72, %42 : vector<4x8x128xf32>
    %74 = arith.negf %73 : vector<4x8x128xf32>
    %75 = math.exp %74 : vector<4x8x128xf32>
    %cst_22 = arith.constant 1.000000e+00 : f32
    %76 = vector.broadcast %cst_22 : f32 to vector<4x8x128xf32>
    %77 = arith.addf %76, %75 : vector<4x8x128xf32>
    %78 = arith.divf %76, %77 : vector<4x8x128xf32>
    %79 = vector.shape_cast %70 : vector<8x128xf32> to vector<1x8x128xf32>
    %80 = vector.broadcast %79 : vector<1x8x128xf32> to vector<4x8x128xf32>
    %81 = arith.mulf %80, %50 : vector<4x8x128xf32>
    %82 = arith.negf %81 : vector<4x8x128xf32>
    %83 = math.exp %82 : vector<4x8x128xf32>
    %cst_23 = arith.constant 1.000000e+00 : f32
    %84 = vector.broadcast %cst_23 : f32 to vector<4x8x128xf32>
    %85 = arith.addf %84, %83 : vector<4x8x128xf32>
    %86 = arith.divf %84, %85 : vector<4x8x128xf32>
    %87 = vector.extract_strided_slice %4 {offsets = [48, 0], sizes = [8, 8], strides = [1, 1]} : vector<72x8xbf16> to vector<8x8xbf16>
    %88 = vector.shape_cast %6 : vector<8x128xf32> to vector<1x8x128xf32>
    %89 = vector.broadcast %88 : vector<1x8x128xf32> to vector<4x8x128xf32>
    %90 = arith.mulf %86, %89 : vector<4x8x128xf32>
    %91 = arith.truncf %90 : vector<4x8x128xf32> to vector<4x8x128xbf16>
    %92 = vector.shape_cast %87 : vector<8x8xbf16> to vector<1x8x8xbf16>
    %93 = vector.broadcast %92 : vector<1x8x8xbf16> to vector<4x8x8xbf16>
    %cst_24 = arith.constant dense<0.000000e+00> : vector<4x8x128xf32>
    %94 = tpu.matmul %93, %91, %cst_24 {dimension_numbers = #tpu.dot_dimension_numbers<[2], [1], [1], [2], [0, 0, 0, 1, 1, 2], [0], [0]>} : vector<4x8x8xbf16>, vector<4x8x128xbf16>, vector<4x8x128xf32> -> vector<4x8x128xf32>
    %95 = arith.mulf %21, %78 : vector<4x8x128xf32>
    %96 = arith.addf %95, %94 : vector<4x8x128xf32>
    %cst_25 = arith.constant 0.000000e+00 : f32
    %97 = vector.broadcast %cst_25 : f32 to vector<4x8x128xf32>
    %98 = arith.cmpf ogt, %96, %97 : vector<4x8x128xf32>
    %cst_26 = arith.constant 1.000000e-01 : f32
    %99 = vector.broadcast %cst_26 : f32 to vector<4x8x128xf32>
    %100 = arith.mulf %99, %96 : vector<4x8x128xf32>
    %101 = arith.select %98, %96, %100 : vector<4x8x128xi1>, vector<4x8x128xf32>
    %102 = vector.shape_cast %7 : vector<8x128xf32> to vector<1x8x128xf32>
    %103 = vector.broadcast %102 : vector<1x8x128xf32> to vector<4x8x128xf32>
    %104 = arith.addf %101, %103 : vector<4x8x128xf32>
    %cst_27 = arith.constant dense<0.000000e+00> : vector<8x128xf32>
    %105 = vector.multi_reduction <add>, %104, %cst_27 [0] : vector<4x8x128xf32> to vector<8x128xf32>
    %cst_28 = arith.constant 4.000000e+00 : f32
    %106 = vector.broadcast %cst_28 : f32 to vector<8x128xf32>
    %107 = arith.divf %105, %106 : vector<8x128xf32>
    %108 = vector.extract_strided_slice %4 {offsets = [56, 0], sizes = [8, 8], strides = [1, 1]} : vector<72x8xbf16> to vector<8x8xbf16>
    %109 = arith.truncf %104 : vector<4x8x128xf32> to vector<4x8x128xbf16>
    %110 = vector.extract_strided_slice %5 {offsets = [48, 0], sizes = [8, 1], strides = [1, 1]} : vector<64x1xf32> to vector<8x1xf32>
    %111 = vector.shape_cast %108 : vector<8x8xbf16> to vector<1x8x8xbf16>
    %112 = vector.broadcast %111 : vector<1x8x8xbf16> to vector<4x8x8xbf16>
    %cst_29 = arith.constant dense<0.000000e+00> : vector<4x8x128xf32>
    %113 = tpu.matmul %112, %109, %cst_29 {dimension_numbers = #tpu.dot_dimension_numbers<[2], [1], [1], [2], [0, 0, 0, 1, 1, 2], [0], [0]>} : vector<4x8x8xbf16>, vector<4x8x128xbf16>, vector<4x8x128xf32> -> vector<4x8x128xf32>
    %114 = vector.shape_cast %110 : vector<8x1xf32> to vector<1x8x1xf32>
    %115 = vector.broadcast %114 : vector<1x8x1xf32> to vector<4x8x128xf32>
    %116 = arith.addf %113, %115 : vector<4x8x128xf32>
    %117 = arith.mulf %116, %78 : vector<4x8x128xf32>
    %118 = arith.addf %117, %94 : vector<4x8x128xf32>
    %cst_30 = arith.constant 0.000000e+00 : f32
    %119 = vector.broadcast %cst_30 : f32 to vector<4x8x128xf32>
    %120 = arith.cmpf ogt, %118, %119 : vector<4x8x128xf32>
    %cst_31 = arith.constant 1.000000e-01 : f32
    %121 = vector.broadcast %cst_31 : f32 to vector<4x8x128xf32>
    %122 = arith.mulf %121, %118 : vector<4x8x128xf32>
    %123 = arith.select %120, %118, %122 : vector<4x8x128xi1>, vector<4x8x128xf32>
    %cst_32 = arith.constant dense<0xFF800000> : vector<8x128xf32>
    %124 = vector.multi_reduction <maximumf>, %123, %cst_32 [0] : vector<4x8x128xf32> to vector<8x128xf32>
    %125 = vector.extract_strided_slice %4 {offsets = [64, 0], sizes = [8, 8], strides = [1, 1]} : vector<72x8xbf16> to vector<8x8xbf16>
    %126 = arith.truncf %124 : vector<8x128xf32> to vector<8x128xbf16>
    %127 = vector.extract_strided_slice %5 {offsets = [56, 0], sizes = [8, 1], strides = [1, 1]} : vector<64x1xf32> to vector<8x1xf32>
    %cst_33 = arith.constant dense<0.000000e+00> : vector<8x128xf32>
    %128 = tpu.matmul %125, %126, %cst_33 {dimension_numbers = #tpu.dot_dimension_numbers<[1], [0], [0], [1], [0, 0, 1, 1], [], []>} : vector<8x8xbf16>, vector<8x128xbf16>, vector<8x128xf32> -> vector<8x128xf32>
    %129 = vector.broadcast %127 : vector<8x1xf32> to vector<8x128xf32>
    %130 = arith.addf %128, %129 : vector<8x128xf32>
    %cst_34 = arith.constant 0.000000e+00 : f32
    %131 = vector.broadcast %cst_34 : f32 to vector<8x128xf32>
    %132 = arith.cmpf ogt, %130, %131 : vector<8x128xf32>
    %cst_35 = arith.constant 1.000000e-01 : f32
    %133 = vector.broadcast %cst_35 : f32 to vector<8x128xf32>
    %134 = arith.mulf %133, %130 : vector<8x128xf32>
    %135 = arith.select %132, %130, %134 : vector<8x128xi1>, vector<8x128xf32>
    %136 = arith.addf %135, %107 : vector<8x128xf32>
    %c0_36 = arith.constant 0 : index
    %c0_37 = arith.constant 0 : index
    %137 = vector.load %arg7[%c0_36, %c0_37] : memref<8x128xf32, #tpu.memory_space<vmem>>, vector<8x128xf32>
    tpu.vector_store %arg7[%c0_36, %c0_37], %136 {strides = array<i32>} : memref<8x128xf32, #tpu.memory_space<vmem>>, vector<8x128xf32>,
    return
  }
  func.func @transform_0(%arg0: i32) -> (i32, i32, i32) {
    %c0_i32 = arith.constant 0 : i32
    %c0_i32_0 = arith.constant 0 : i32
    %c0_i32_1 = arith.constant 0 : i32
    return %c0_i32, %c0_i32_0, %arg0 : i32, i32, i32
  }
  func.func @transform_1(%arg0: i32) -> (i32, i32) {
    %c0_i32 = arith.constant 0 : i32
    %c0_i32_0 = arith.constant 0 : i32
    return %c0_i32, %arg0 : i32, i32
  }
  func.func @transform_2(%arg0: i32) -> (i32, i32) {
    %c0_i32 = arith.constant 0 : i32
    %c0_i32_0 = arith.constant 0 : i32
    return %c0_i32, %arg0 : i32, i32
  }
  func.func @transform_3(%arg0: i32) -> (i32, i32) {
    %c0_i32 = arith.constant 0 : i32
    %c0_i32_0 = arith.constant 0 : i32
    %c0_i32_1 = arith.constant 0 : i32
    return %c0_i32, %c0_i32_0 : i32, i32
  }
  func.func @transform_4(%arg0: i32) -> (i32, i32) {
    %c0_i32 = arith.constant 0 : i32
    %c0_i32_0 = arith.constant 0 : i32
    %c0_i32_1 = arith.constant 0 : i32
    return %c0_i32, %c0_i32_0 : i32, i32
  }
  func.func @transform_5(%arg0: i32) -> (i32, i32) {
    %c0_i32 = arith.constant 0 : i32
    %c0_i32_0 = arith.constant 0 : i32
    %c0_i32_1 = arith.constant 0 : i32
    return %c0_i32, %c0_i32_0 : i32, i32
  }
  func.func @transform_6(%arg0: i32) -> (i32, i32) {
    %c0_i32 = arith.constant 0 : i32
    %c0_i32_0 = arith.constant 0 : i32
    return %c0_i32, %arg0 : i32, i32
  }
}

</mosaic_0001>

<llo_original>
// kernel: gat_gcn_forward.1
$region0: #{gat_gcn_forward.1}
  #allocation0 [shape = 'u32[]', space=smem, size = 0x4, offset = 0x4, fixed_abs, tag = 'smem constant byte address 0x4 - core index']
  #allocation1 [shape = 'u32[144,128]{1,0:T(1,128)}', space=vmem, size = 0x12000, scoped, tag = 'internal scratch']
  %s0 = inlined_call_operand.vmem [shape: bf16[4,19,128], index: 0, kind: input, shape index: {}]
  %s1 = inlined_call_operand.vmem [shape: bf16[8,128], index: 1, kind: input, shape index: {}]
  %s2 = inlined_call_operand.vmem [shape: bf16[8,128], index: 2, kind: input, shape index: {}]
  %s3 = inlined_call_operand.vmem [shape: bf16[24,19], index: 3, kind: input, shape index: {}]
  %s4 = inlined_call_operand.vmem [shape: bf16[72,8], index: 4, kind: input, shape index: {}]
  %s5 = inlined_call_operand.vmem [shape: f32[64,1], index: 5, kind: input, shape index: {}]
  %s6 = inlined_call_operand.vmem [shape: f32[8,128], index: 6, kind: output, shape index: {}]
  %s7 = sld [smem:[#allocation0]]
  $region34: #{gat_gcn_forward.1} parent=0
    _
  %s9 = ssub.s32 1, %s7
  %s10 = scalar_select 0, %s9, %s7
  // Predicated region
  $region2: #{gat_gcn_forward.1} parent=0 // pred_check
    _
  $region3: #{gat_gcn_forward.1} parent=0 // pred_check_branch
    %12 = sbr.rel (0) target = $region5
  $region4: #{gat_gcn_forward.1} parent=0 // pred_region
    _
  $region5: #{gat_gcn_forward.1} parent=0 // pred_fallthru
    _
  // Predicated region
  $region6: #{gat_gcn_forward.1} parent=0 // pred_check
    _
  $region7: #{gat_gcn_forward.1} parent=0 // pred_check_branch
    %14 = sbr.rel (0) target = $region9
  $region8: #{gat_gcn_forward.1} parent=0 // pred_region
    _
  $region9: #{gat_gcn_forward.1} parent=0 // pred_fallthru
    _
  // Predicated region
  $region10: #{gat_gcn_forward.1} parent=0 // pred_check
    _
  $region11: #{gat_gcn_forward.1} parent=0 // pred_check_branch
    %16 = sbr.rel (0) target = $region13
  $region12: #{gat_gcn_forward.1} parent=0 // pred_region
    _
  $region13: #{gat_gcn_forward.1} parent=0 // pred_fallthru
    _
  // Predicated region
  $region14: #{gat_gcn_forward.1} parent=0 // pred_check
    _
  $region15: #{gat_gcn_forward.1} parent=0 // pred_check_branch
    %18 = sbr.rel (0) target = $region17
  $region16: #{gat_gcn_forward.1} parent=0 // pred_region
    _
  $region17: #{gat_gcn_forward.1} parent=0 // pred_fallthru
    _
  // Predicated region
  $region18: #{gat_gcn_forward.1} parent=0 // pred_check
    _
  $region19: #{gat_gcn_forward.1} parent=0 // pred_check_branch
    %20 = sbr.rel (0) target = $region21
  $region20: #{gat_gcn_forward.1} parent=0 // pred_region
    _
  $region21: #{gat_gcn_forward.1} parent=0 // pred_fallthru
    _
  // Predicated region
  $region22: #{gat_gcn_forward.1} parent=0 // pred_check
    _
  $region23: #{gat_gcn_forward.1} parent=0 // pred_check_branch
    %22 = sbr.rel (0) target = $region25
  $region24: #{gat_gcn_forward.1} parent=0 // pred_region
    _
  $region25: #{gat_gcn_forward.1} parent=0 // pred_fallthru
    _
  %v24 = vld [vmem:[%s0] sm:$0xf]
  %v25 = vld [vmem:[%s0 + $0x4] sm:$0xf]
  %v26 = vld [vmem:[%s0 + $0x8] sm:$0x3]
  %v27 = vld [vmem:[%s0 + $0xc] sm:$0xf]
  %v28 = vld [vmem:[%s0 + $0x10] sm:$0xf]
  %v29 = vld [vmem:[%s0 + $0x14] sm:$0x3]
  %v30 = vld [vmem:[%s0 + $0x18] sm:$0xf]
  %v31 = vld [vmem:[%s0 + $0x1c] sm:$0xf]
  %v32 = vld [vmem:[%s0 + $0x20] sm:$0x3]
  %v33 = vld [vmem:[%s0 + $0x24] sm:$0xf]
  %v34 = vld [vmem:[%s0 + $0x28] sm:$0xf]
  %v35 = vld [vmem:[%s0 + $0x2c] sm:$0x3]
  %v36 = vld [vmem:[%s1] sm:$0xf]
  %v37 = vld [vmem:[%s2] sm:$0xf]
  %v38 = vld [vmem:[%s3] sm:$0xf]
  %v39 = vld [vmem:[%s3 + $0x4] sm:$0xf]
  %v40 = vld [vmem:[%s3 + $0x8] sm:$0xf]
  %v41 = vld [vmem:[%s4] sm:$0xf]
  %v42 = vld [vmem:[%s4 + $0x4] sm:$0xf]
  %v43 = vld [vmem:[%s4 + $0x8] sm:$0xf]
  %v44 = vld [vmem:[%s4 + $0xc] sm:$0xf]
  %v45 = vld [vmem:[%s4 + $0x10] sm:$0xf]
  %v46 = vld [vmem:[%s4 + $0x14] sm:$0xf]
  %v47 = vld [vmem:[%s4 + $0x18] sm:$0xf]
  %v48 = vld [vmem:[%s4 + $0x1c] sm:$0xf]
  %v49 = vld [vmem:[%s4 + $0x20] sm:$0xf]
  %v50 = vld [vmem:[%s5] sm:$0xff]
  %v51 = vld [vmem:[%s5 + $0x8] sm:$0xff]
  %v52 = vld [vmem:[%s5 + $0x10] sm:$0xff]
  %v53 = vld [vmem:[%s5 + $0x18] sm:$0xff]
  %v54 = vld [vmem:[%s5 + $0x20] sm:$0xff]
  %v55 = vld [vmem:[%s5 + $0x28] sm:$0xff]
  %v56 = vld [vmem:[%s5 + $0x30] sm:$0xff]
  %v57 = vld [vmem:[%s5 + $0x38] sm:$0xff]
  %v58 = vunpack.c.l.bf16 %v36
  %v59 = vunpack.c.l.bf16 %v37
  %v63 = vunpack.c.l.b16 %v38
  %v64 = vunpack.c.l.b16 %v39
  %v65 = vunpack.c.l.b16 %v40
  %v66 = vpack.c.b16 %v64, %v63
  %v67 = vpack.c.b16 %v65, %v65
  %v71 = vunpack.c.l.b16 %v24
  %v72 = vunpack.c.l.b16 %v25
  %v73 = vunpack.c.l.b16 %v26
  %v74 = vpack.c.b16 %v72, %v71
  %v75 = vpack.c.b16 %v73, %v73
  %vm77 = vcmask 154624
  %v79 = vsel %vm77, %v66, 0
  %v82 = vsel %vm77, %v67, 0
  %vm84 = vcmask 1040384
  %vm85 = vcmask 1041408
  %v86 = vsel %vm84, 4294967295, 65535
  %v87 = vsel %vm85, %v86, 0
  %v89 = vand.u32 %v75, %v87
  %91 = vmatprep.subr.bf16.mxu0 0
  %92 = vmatpush1.bf16.msra.mxu0 %v74
  %93 = vmatprep.subr.bf16.mxu0 0
  %94 = vmatpush1.bf16.msra.mxu0 %v89
  %95 = vmatprep.subr.bf16.mxu0 0
  %96 = vmatpush1.bf16.msra.mxu0 0
  %97 = vmatprep.subr.bf16.mxu0 0
  %98 = vmatpush1.bf16.msra.mxu0 0
  %99 = vmatprep.subr.bf16.mxu0 0
  %100 = vmatpush1.bf16.msra.mxu0 0
  %101 = vmatprep.subr.bf16.mxu0 0
  %102 = vmatpush1.bf16.msra.mxu0 0
  %103 = vmatprep.subr.bf16.mxu0 0
  %104 = vmatpush1.bf16.msra.mxu0 0
  %105 = vmatprep.subr.bf16.mxu0 0
  %106 = vmatpush1.bf16.msra.mxu0 0
  %107 = vmatprep.subr.bf16.mxu0 0
  %108 = vmatpush1.bf16.msra.mxu0 0
  %109 = vmatprep.subr.bf16.mxu0 0
  %110 = vmatpush1.bf16.msra.mxu0 0
  %111 = vmatprep.subr.bf16.mxu0 0
  %112 = vmatpush1.bf16.msra.mxu0 0
  %113 = vmatprep.subr.bf16.mxu0 0
  %114 = vmatpush1.bf16.msra.mxu0 0
  %115 = vmatprep.subr.bf16.mxu0 0
  %116 = vmatpush1.bf16.msra.mxu0 0
  %117 = vmatprep.subr.bf16.mxu0 0
  %118 = vmatpush1.bf16.msra.mxu0 0
  %119 = vmatprep.subr.bf16.mxu0 0
  %120 = vmatpush1.bf16.msra.mxu0 0
  %121 = vmatprep.subr.bf16.mxu0 0
  %122 = vmatpush1.bf16.msra.mxu0 0
  %123 = vmatprep.mubr.bf16.mxu0 0
  %124 = vmatmul.mubr.bf16.gmra.mrb[0].mxu0 %v79
  %v125 = vpop.f32.mrb[0].mxu0
  %v126 = vadd.f32 0.0, %v125
  %v127 = vpop.f32.mrb[0].mxu0
  %v128 = vpop.f32.mrb[0].mxu0
  %v129 = vadd.f32 0.0, %v128
  %v130 = vpop.f32.mrb[0].mxu0
  %131 = vmatprep.mubr.bf16.mxu0 0
  %132 = vmatmul.mubr.bf16.gmra.mrb[0].mxu0 %v82
  %v133 = vpop.f32.mrb[0].mxu0
  %v134 = vadd.f32 0.0, %v133
  %v135 = vpop.f32.mrb[0].mxu0
  %v136 = vpop.f32.mrb[0].mxu0
  %v137 = vpop.f32.mrb[0].mxu0
  %138 = vdwg.mxu0
  %v142 = vunpack.c.l.b16 %v27
  %v143 = vunpack.c.l.b16 %v28
  %v144 = vunpack.c.l.b16 %v29
  %v145 = vpack.c.b16 %v143, %v142
  %v146 = vpack.c.b16 %v144, %v144
  %v149 = vand.u32 %v146, %v87
  %151 = vmatprep.subr.bf16.mxu0 0
  %152 = vmatpush1.bf16.msra.mxu0 %v145
  %153 = vmatprep.subr.bf16.mxu0 0
  %154 = vmatpush1.bf16.msra.mxu0 %v149
  %155 = vmatprep.subr.bf16.mxu0 0
  %156 = vmatpush1.bf16.msra.mxu0 0
  %157 = vmatprep.subr.bf16.mxu0 0
  %158 = vmatpush1.bf16.msra.mxu0 0
  %159 = vmatprep.subr.bf16.mxu0 0
  %160 = vmatpush1.bf16.msra.mxu0 0
  %161 = vmatprep.subr.bf16.mxu0 0
  %162 = vmatpush1.bf16.msra.mxu0 0
  %163 = vmatprep.subr.bf16.mxu0 0
  %164 = vmatpush1.bf16.msra.mxu0 0
  %165 = vmatprep.subr.bf16.mxu0 0
  %166 = vmatpush1.bf16.msra.mxu0 0
  %167 = vmatprep.subr.bf16.mxu0 0
  %168 = vmatpush1.bf16.msra.mxu0 0
  %169 = vmatprep.subr.bf16.mxu0 0
  %170 = vmatpush1.bf16.msra.mxu0 0
  %171 = vmatprep.subr.bf16.mxu0 0
  %172 = vmatpush1.bf16.msra.mxu0 0
  %173 = vmatprep.subr.bf16.mxu0 0
  %174 = vmatpush1.bf16.msra.mxu0 0
  %175 = vmatprep.subr.bf16.mxu0 0
  %176 = vmatpush1.bf16.msra.mxu0 0
  %177 = vmatprep.subr.bf16.mxu0 0
  %178 = vmatpush1.bf16.msra.mxu0 0
  %179 = vmatprep.subr.bf16.mxu0 0
  %180 = vmatpush1.bf16.msra.mxu0 0
  %181 = vmatprep.subr.bf16.mxu0 0
  %182 = vmatpush1.bf16.msra.mxu0 0
  %183 = vmatprep.mubr.bf16.mxu0 0
  %184 = vmatmul.mubr.bf16.gmra.mrb[0].mxu0 %v79
  %v185 = vpop.f32.mrb[0].mxu0
  %v186 = vadd.f32 0.0, %v185
  %v187 = vpop.f32.mrb[0].mxu0
  %v188 = vpop.f32.mrb[0].mxu0
  %v189 = vadd.f32 0.0, %v188
  %v190 = vpop.f32.mrb[0].mxu0
  %191 = vmatprep.mubr.bf16.mxu0 0
  %192 = vmatmul.mubr.bf16.gmra.mrb[0].mxu0 %v82
  %v193 = vpop.f32.mrb[0].mxu0
  %v194 = vadd.f32 0.0, %v193
  %v195 = vpop.f32.mrb[0].mxu0
  %v196 = vpop.f32.mrb[0].mxu0
  %v197 = vpop.f32.mrb[0].mxu0
  %198 = vdwg.mxu0
  %v202 = vunpack.c.l.b16 %v30
  %v203 = vunpack.c.l.b16 %v31
  %v204 = vunpack.c.l.b16 %v32
  %v205 = vpack.c.b16 %v203, %v202
  %v206 = vpack.c.b16 %v204, %v204
  %v209 = vand.u32 %v206, %v87
  %211 = vmatprep.subr.bf16.mxu0 0
  %212 = vmatpush1.bf16.msra.mxu0 %v205
  %213 = vmatprep.subr.bf16.mxu0 0
  %214 = vmatpush1.bf16.msra.mxu0 %v209
  %215 = vmatprep.subr.bf16.mxu0 0
  %216 = vmatpush1.bf16.msra.mxu0 0
  %217 = vmatprep.subr.bf16.mxu0 0
  %218 = vmatpush1.bf16.msra.mxu0 0
  %219 = vmatprep.subr.bf16.mxu0 0
  %220 = vmatpush1.bf16.msra.mxu0 0
  %221 = vmatprep.subr.bf16.mxu0 0
  %222 = vmatpush1.bf16.msra.mxu0 0
  %223 = vmatprep.subr.bf16.mxu0 0
  %224 = vmatpush1.bf16.msra.mxu0 0
  %225 = vmatprep.subr.bf16.mxu0 0
  %226 = vmatpush1.bf16.msra.mxu0 0
  %227 = vmatprep.subr.bf16.mxu0 0
  %228 = vmatpush1.bf16.msra.mxu0 0
  %229 = vmatprep.subr.bf16.mxu0 0
  %230 = vmatpush1.bf16.msra.mxu0 0
  %231 = vmatprep.subr.bf16.mxu0 0
  %232 = vmatpush1.bf16.msra.mxu0 0
  %233 = vmatprep.subr.bf16.mxu0 0
  %234 = vmatpush1.bf16.msra.mxu0 0
  %235 = vmatprep.subr.bf16.mxu0 0
  %236 = vmatpush1.bf16.msra.mxu0 0
  %237 = vmatprep.subr.bf16.mxu0 0
  %238 = vmatpush1.bf16.msra.mxu0 0
  %239 = vmatprep.subr.bf16.mxu0 0
  %240 = vmatpush1.bf16.msra.mxu0 0
  %241 = vmatprep.subr.bf16.mxu0 0
  %242 = vmatpush1.bf16.msra.mxu0 0
  %243 = vmatprep.mubr.bf16.mxu0 0
  %244 = vmatmul.mubr.bf16.gmra.mrb[0].mxu0 %v79
  %v245 = vpop.f32.mrb[0].mxu0
  %v246 = vadd.f32 0.0, %v245
  %v247 = vpop.f32.mrb[0].mxu0
  %v248 = vpop.f32.mrb[0].mxu0
  %v249 = vadd.f32 0.0, %v248
  %v250 = vpop.f32.mrb[0].mxu0
  %251 = vmatprep.mubr.bf16.mxu0 0
  %252 = vmatmul.mubr.bf16.gmra.mrb[0].mxu0 %v82
  %v253 = vpop.f32.mrb[0].mxu0
  %v254 = vadd.f32 0.0, %v253
  %v255 = vpop.f32.mrb[0].mxu0
  %v256 = vpop.f32.mrb[0].mxu0
  %v257 = vpop.f32.mrb[0].mxu0
  %258 = vdwg.mxu0
  %v262 = vunpack.c.l.b16 %v33
  %v263 = vunpack.c.l.b16 %v34
  %v264 = vunpack.c.l.b16 %v35
  %v265 = vpack.c.b16 %v263, %v262
  %v266 = vpack.c.b16 %v264, %v264
  %v269 = vand.u32 %v266, %v87
  %271 = vmatprep.subr.bf16.mxu0 0
  %272 = vmatpush1.bf16.msra.mxu0 %v265
  %273 = vmatprep.subr.bf16.mxu0 0
  %274 = vmatpush1.bf16.msra.mxu0 %v269
  %275 = vmatprep.subr.bf16.mxu0 0
  %276 = vmatpush1.bf16.msra.mxu0 0
  %277 = vmatprep.subr.bf16.mxu0 0
  %278 = vmatpush1.bf16.msra.mxu0 0
  %279 = vmatprep.subr.bf16.mxu0 0
  %280 = vmatpush1.bf16.msra.mxu0 0
  %281 = vmatprep.subr.bf16.mxu0 0
  %282 = vmatpush1.bf16.msra.mxu0 0
  %283 = vmatprep.subr.bf16.mxu0 0
  %284 = vmatpush1.bf16.msra.mxu0 0
  %285 = vmatprep.subr.bf16.mxu0 0
  %286 = vmatpush1.bf16.msra.mxu0 0
  %287 = vmatprep.subr.bf16.mxu0 0
  %288 = vmatpush1.bf16.msra.mxu0 0
  %289 = vmatprep.subr.bf16.mxu0 0
  %290 = vmatpush1.bf16.msra.mxu0 0
  %291 = vmatprep.subr.bf16.mxu0 0
  %292 = vmatpush1.bf16.msra.mxu0 0
  %293 = vmatprep.subr.bf16.mxu0 0
  %294 = vmatpush1.bf16.msra.mxu0 0
  %295 = vmatprep.subr.bf16.mxu0 0
  %296 = vmatpush1.bf16.msra.mxu0 0
  %297 = vmatprep.subr.bf16.mxu0 0
  %298 = vmatpush1.bf16.msra.mxu0 0
  %299 = vmatprep.subr.bf16.mxu0 0
  %300 = vmatpush1.bf16.msra.mxu0 0
  %301 = vmatprep.subr.bf16.mxu0 0
  %302 = vmatpush1.bf16.msra.mxu0 0
  %303 = vmatprep.mubr.bf16.mxu0 0
  %304 = vmatmul.mubr.bf16.gmra.mrb[0].mxu0 %v79
  %v305 = vpop.f32.mrb[0].mxu0
  %v306 = vadd.f32 0.0, %v305
  %v307 = vpop.f32.mrb[0].mxu0
  %v308 = vpop.f32.mrb[0].mxu0
  %v309 = vadd.f32 0.0, %v308
  %v310 = vpop.f32.mrb[0].mxu0
  %311 = vmatprep.mubr.bf16.mxu0 0
  %312 = vmatmul.mubr.bf16.gmra.mrb[0].mxu0 %v82
  %v313 = vpop.f32.mrb[0].mxu0
  %v314 = vadd.f32 0.0, %v313
  %v315 = vpop.f32.mrb[0].mxu0
  %v316 = vpop.f32.mrb[0].mxu0
  %v317 = vpop.f32.mrb[0].mxu0
  %318 = vdwg.mxu0
  %320 = vset.pattern.permute.xlu0 0
  %321 = vperm.xlu0 %320, %v50
  %v322 = vpop.permute.xlu0 %321
  %v324 = vadd.f32 %v126, %v322
  %v325 = vadd.f32 %v186, %v322
  %v326 = vadd.f32 %v246, %v322
  %v327 = vadd.f32 %v306, %v322
  %329 = vset.pattern.permute.xlu0 0
  %330 = vperm.xlu0 %329, %v51
  %v331 = vpop.permute.xlu0 %330
  %v333 = vadd.f32 %v129, %v331
  %v334 = vadd.f32 %v189, %v331
  %v335 = vadd.f32 %v249, %v331
  %v336 = vadd.f32 %v309, %v331
  %v339 = vunpack.c.l.b16 %v41
  %v340 = vunpack.c.l.b16 %v42
  %v341 = vpack.c.b16 %v340, %v339
  %vm342 = vcmask 64512
  %v344 = vsel %vm342, %v341, 0
  %vm346 = vcmask 1043456
  %v348 = vsel %vm346, %v36, 0
  %350 = vmatprep.subr.bf16.mxu0 0
  %351 = vmatpush1.bf16.msra.mxu0 %v348
  %352 = vmatprep.subr.bf16.mxu0 0
  %353 = vmatpush1.bf16.msra.mxu0 0
  %354 = vmatprep.subr.bf16.mxu0 0
  %355 = vmatpush1.bf16.msra.mxu0 0
  %356 = vmatprep.subr.bf16.mxu0 0
  %357 = vmatpush1.bf16.msra.mxu0 0
  %358 = vmatprep.subr.bf16.mxu0 0
  %359 = vmatpush1.bf16.msra.mxu0 0
  %360 = vmatprep.subr.bf16.mxu0 0
  %361 = vmatpush1.bf16.msra.mxu0 0
  %362 = vmatprep.subr.bf16.mxu0 0
  %363 = vmatpush1.bf16.msra.mxu0 0
  %364 = vmatprep.subr.bf16.mxu0 0
  %365 = vmatpush1.bf16.msra.mxu0 0
  %366 = vmatprep.subr.bf16.mxu0 0
  %367 = vmatpush1.bf16.msra.mxu0 0
  %368 = vmatprep.subr.bf16.mxu0 0
  %369 = vmatpush1.bf16.msra.mxu0 0
  %370 = vmatprep.subr.bf16.mxu0 0
  %371 = vmatpush1.bf16.msra.mxu0 0
  %372 = vmatprep.subr.bf16.mxu0 0
  %373 = vmatpush1.bf16.msra.mxu0 0
  %374 = vmatprep.subr.bf16.mxu0 0
  %375 = vmatpush1.bf16.msra.mxu0 0
  %376 = vmatprep.subr.bf16.mxu0 0
  %377 = vmatpush1.bf16.msra.mxu0 0
  %378 = vmatprep.subr.bf16.mxu0 0
  %379 = vmatpush1.bf16.msra.mxu0 0
  %380 = vmatprep.subr.bf16.mxu0 0
  %381 = vmatpush1.bf16.msra.mxu0 0
  %382 = vmatprep.mubr.bf16.mxu0 0
  %383 = vmatmul.mubr.bf16.gmra.mrb[0].mxu0 %v344
  %v384 = vpop.f32.mrb[0].mxu0
  %v385 = vadd.f32 0.0, %v384
  %v386 = vpop.f32.mrb[0].mxu0
  %v387 = vpop.f32.mrb[0].mxu0
  %v388 = vadd.f32 0.0, %v387
  %v389 = vpop.f32.mrb[0].mxu0
  %390 = vdwg.mxu0
  %v391 = vadd.f32 %v324, %v385
  %v392 = vadd.f32 %v325, %v385
  %v393 = vadd.f32 %v326, %v385
  %v394 = vadd.f32 %v327, %v385
  %vm395 = vcmp.gt.f32.partialorder %v391, 0.0
  %vm396 = vcmp.gt.f32.partialorder %v392, 0.0
  %vm397 = vcmp.gt.f32.partialorder %v393, 0.0
  %vm398 = vcmp.gt.f32.partialorder %v394, 0.0
  %v399 = vmul.f32 %v391, 0.1
  %v400 = vmul.f32 %v392, 0.1
  %v401 = vmul.f32 %v393, 0.1
  %v402 = vmul.f32 %v394, 0.1
  %v403 = vsel %vm395, %v391, %v399
  %v404 = vsel %vm396, %v392, %v400
  %v405 = vsel %vm397, %v393, %v401
  %v406 = vsel %vm398, %v394, %v402
  %v407 = vpack.c.bf16 %v403, %v403
  %v408 = vpack.c.bf16 %v404, %v404
  %v409 = vpack.c.bf16 %v405, %v405
  %v410 = vpack.c.bf16 %v406, %v406
  %412 = vset.pattern.permute.xlu0 0
  %413 = vperm.xlu0 %412, %v52
  %v414 = vpop.permute.xlu0 %413
  %v417 = vsel %vm342, %v43, 0
  %v420 = vsel %vm346, %v407, 0
  %422 = vmatprep.subr.bf16.mxu0 0
  %423 = vmatpush1.bf16.msra.mxu0 %v420
  %424 = vmatprep.subr.bf16.mxu0 0
  %425 = vmatpush1.bf16.msra.mxu0 0
  %426 = vmatprep.subr.bf16.mxu0 0
  %427 = vmatpush1.bf16.msra.mxu0 0
  %428 = vmatprep.subr.bf16.mxu0 0
  %429 = vmatpush1.bf16.msra.mxu0 0
  %430 = vmatprep.subr.bf16.mxu0 0
  %431 = vmatpush1.bf16.msra.mxu0 0
  %432 = vmatprep.subr.bf16.mxu0 0
  %433 = vmatpush1.bf16.msra.mxu0 0
  %434 = vmatprep.subr.bf16.mxu0 0
  %435 = vmatpush1.bf16.msra.mxu0 0
  %436 = vmatprep.subr.bf16.mxu0 0
  %437 = vmatpush1.bf16.msra.mxu0 0
  %438 = vmatprep.subr.bf16.mxu0 0
  %439 = vmatpush1.bf16.msra.mxu0 0
  %440 = vmatprep.subr.bf16.mxu0 0
  %441 = vmatpush1.bf16.msra.mxu0 0
  %442 = vmatprep.subr.bf16.mxu0 0
  %443 = vmatpush1.bf16.msra.mxu0 0
  %444 = vmatprep.subr.bf16.mxu0 0
  %445 = vmatpush1.bf16.msra.mxu0 0
  %446 = vmatprep.subr.bf16.mxu0 0
  %447 = vmatpush1.bf16.msra.mxu0 0
  %448 = vmatprep.subr.bf16.mxu0 0
  %449 = vmatpush1.bf16.msra.mxu0 0
  %450 = vmatprep.subr.bf16.mxu0 0
  %451 = vmatpush1.bf16.msra.mxu0 0
  %452 = vmatprep.subr.bf16.mxu0 0
  %453 = vmatpush1.bf16.msra.mxu0 0
  %454 = vmatprep.mubr.bf16.mxu0 0
  %455 = vmatmul.mubr.bf16.gmra.mrb[0].mxu0 %v417
  %v456 = vpop.f32.mrb[0].mxu0
  %v457 = vadd.f32 %v414, %v456
  %v458 = vpop.f32.mrb[0].mxu0
  %v459 = vpop.f32.mrb[0].mxu0
  %v460 = vpop.f32.mrb[0].mxu0
  %461 = vdwg.mxu0
  %v463 = vsel %vm346, %v408, 0
  %465 = vmatprep.subr.bf16.mxu0 0
  %466 = vmatpush1.bf16.msra.mxu0 %v463
  %467 = vmatprep.subr.bf16.mxu0 0
  %468 = vmatpush1.bf16.msra.mxu0 0
  %469 = vmatprep.subr.bf16.mxu0 0
  %470 = vmatpush1.bf16.msra.mxu0 0
  %471 = vmatprep.subr.bf16.mxu0 0
  %472 = vmatpush1.bf16.msra.mxu0 0
  %473 = vmatprep.subr.bf16.mxu0 0
  %474 = vmatpush1.bf16.msra.mxu0 0
  %475 = vmatprep.subr.bf16.mxu0 0
  %476 = vmatpush1.bf16.msra.mxu0 0
  %477 = vmatprep.subr.bf16.mxu0 0
  %478 = vmatpush1.bf16.msra.mxu0 0
  %479 = vmatprep.subr.bf16.mxu0 0
  %480 = vmatpush1.bf16.msra.mxu0 0
  %481 = vmatprep.subr.bf16.mxu0 0
  %482 = vmatpush1.bf16.msra.mxu0 0
  %483 = vmatprep.subr.bf16.mxu0 0
  %484 = vmatpush1.bf16.msra.mxu0 0
  %485 = vmatprep.subr.bf16.mxu0 0
  %486 = vmatpush1.bf16.msra.mxu0 0
  %487 = vmatprep.subr.bf16.mxu0 0
  %488 = vmatpush1.bf16.msra.mxu0 0
  %489 = vmatprep.subr.bf16.mxu0 0
  %490 = vmatpush1.bf16.msra.mxu0 0
  %491 = vmatprep.subr.bf16.mxu0 0
  %492 = vmatpush1.bf16.msra.mxu0 0
  %493 = vmatprep.subr.bf16.mxu0 0
  %494 = vmatpush1.bf16.msra.mxu0 0
  %495 = vmatprep.subr.bf16.mxu0 0
  %496 = vmatpush1.bf16.msra.mxu0 0
  %497 = vmatprep.mubr.bf16.mxu0 0
  %498 = vmatmul.mubr.bf16.gmra.mrb[0].mxu0 %v417
  %v499 = vpop.f32.mrb[0].mxu0
  %v500 = vadd.f32 %v414, %v499
  %v501 = vpop.f32.mrb[0].mxu0
  %v502 = vpop.f32.mrb[0].mxu0
  %v503 = vpop.f32.mrb[0].mxu0
  %504 = vdwg.mxu0
  %v506 = vsel %vm346, %v409, 0
  %508 = vmatprep.subr.bf16.mxu0 0
  %509 = vmatpush1.bf16.msra.mxu0 %v506
  %510 = vmatprep.subr.bf16.mxu0 0
  %511 = vmatpush1.bf16.msra.mxu0 0
  %512 = vmatprep.subr.bf16.mxu0 0
  %513 = vmatpush1.bf16.msra.mxu0 0
  %514 = vmatprep.subr.bf16.mxu0 0
  %515 = vmatpush1.bf16.msra.mxu0 0
  %516 = vmatprep.subr.bf16.mxu0 0
  %517 = vmatpush1.bf16.msra.mxu0 0
  %518 = vmatprep.subr.bf16.mxu0 0
  %519 = vmatpush1.bf16.msra.mxu0 0
  %520 = vmatprep.subr.bf16.mxu0 0
  %521 = vmatpush1.bf16.msra.mxu0 0
  %522 = vmatprep.subr.bf16.mxu0 0
  %523 = vmatpush1.bf16.msra.mxu0 0
  %524 = vmatprep.subr.bf16.mxu0 0
  %525 = vmatpush1.bf16.msra.mxu0 0
  %526 = vmatprep.subr.bf16.mxu0 0
  %527 = vmatpush1.bf16.msra.mxu0 0
  %528 = vmatprep.subr.bf16.mxu0 0
  %529 = vmatpush1.bf16.msra.mxu0 0
  %530 = vmatprep.subr.bf16.mxu0 0
  %531 = vmatpush1.bf16.msra.mxu0 0
  %532 = vmatprep.subr.bf16.mxu0 0
  %533 = vmatpush1.bf16.msra.mxu0 0
  %534 = vmatprep.subr.bf16.mxu0 0
  %535 = vmatpush1.bf16.msra.mxu0 0
  %536 = vmatprep.subr.bf16.mxu0 0
  %537 = vmatpush1.bf16.msra.mxu0 0
  %538 = vmatprep.subr.bf16.mxu0 0
  %539 = vmatpush1.bf16.msra.mxu0 0
  %540 = vmatprep.mubr.bf16.mxu0 0
  %541 = vmatmul.mubr.bf16.gmra.mrb[0].mxu0 %v417
  %v542 = vpop.f32.mrb[0].mxu0
  %v543 = vadd.f32 %v414, %v542
  %v544 = vpop.f32.mrb[0].mxu0
  %v545 = vpop.f32.mrb[0].mxu0
  %v546 = vpop.f32.mrb[0].mxu0
  %547 = vdwg.mxu0
  %v549 = vsel %vm346, %v410, 0
  %551 = vmatprep.subr.bf16.mxu0 0
  %552 = vmatpush1.bf16.msra.mxu0 %v549
  %553 = vmatprep.subr.bf16.mxu0 0
  %554 = vmatpush1.bf16.msra.mxu0 0
  %555 = vmatprep.subr.bf16.mxu0 0
  %556 = vmatpush1.bf16.msra.mxu0 0
  %557 = vmatprep.subr.bf16.mxu0 0
  %558 = vmatpush1.bf16.msra.mxu0 0
  %559 = vmatprep.subr.bf16.mxu0 0
  %560 = vmatpush1.bf16.msra.mxu0 0
  %561 = vmatprep.subr.bf16.mxu0 0
  %562 = vmatpush1.bf16.msra.mxu0 0
  %563 = vmatprep.subr.bf16.mxu0 0
  %564 = vmatpush1.bf16.msra.mxu0 0
  %565 = vmatprep.subr.bf16.mxu0 0
  %566 = vmatpush1.bf16.msra.mxu0 0
  %567 = vmatprep.subr.bf16.mxu0 0
  %568 = vmatpush1.bf16.msra.mxu0 0
  %569 = vmatprep.subr.bf16.mxu0 0
  %570 = vmatpush1.bf16.msra.mxu0 0
  %571 = vmatprep.subr.bf16.mxu0 0
  %572 = vmatpush1.bf16.msra.mxu0 0
  %573 = vmatprep.subr.bf16.mxu0 0
  %574 = vmatpush1.bf16.msra.mxu0 0
  %575 = vmatprep.subr.bf16.mxu0 0
  %576 = vmatpush1.bf16.msra.mxu0 0
  %577 = vmatprep.subr.bf16.mxu0 0
  %578 = vmatpush1.bf16.msra.mxu0 0
  %579 = vmatprep.subr.bf16.mxu0 0
  %580 = vmatpush1.bf16.msra.mxu0 0
  %581 = vmatprep.subr.bf16.mxu0 0
  %582 = vmatpush1.bf16.msra.mxu0 0
  %583 = vmatprep.mubr.bf16.mxu0 0
  %584 = vmatmul.mubr.bf16.gmra.mrb[0].mxu0 %v417
  %v585 = vpop.f32.mrb[0].mxu0
  %v586 = vadd.f32 %v414, %v585
  %v587 = vpop.f32.mrb[0].mxu0
  %v588 = vpop.f32.mrb[0].mxu0
  %v589 = vpop.f32.mrb[0].mxu0
  %590 = vdwg.mxu0
  %592 = vset.pattern.permute.xlu0 0
  %593 = vperm.xlu0 %592, %v53
  %v594 = vpop.permute.xlu0 %593
  %v597 = vsel %vm342, %v44, 0
  %599 = vmatprep.subr.bf16.mxu0 0
  %600 = vmatpush1.bf16.msra.mxu0 %v420
  %601 = vmatprep.subr.bf16.mxu0 0
  %602 = vmatpush1.bf16.msra.mxu0 0
  %603 = vmatprep.subr.bf16.mxu0 0
  %604 = vmatpush1.bf16.msra.mxu0 0
  %605 = vmatprep.subr.bf16.mxu0 0
  %606 = vmatpush1.bf16.msra.mxu0 0
  %607 = vmatprep.subr.bf16.mxu0 0
  %608 = vmatpush1.bf16.msra.mxu0 0
  %609 = vmatprep.subr.bf16.mxu0 0
  %610 = vmatpush1.bf16.msra.mxu0 0
  %611 = vmatprep.subr.bf16.mxu0 0
  %612 = vmatpush1.bf16.msra.mxu0 0
  %613 = vmatprep.subr.bf16.mxu0 0
  %614 = vmatpush1.bf16.msra.mxu0 0
  %615 = vmatprep.subr.bf16.mxu0 0
  %616 = vmatpush1.bf16.msra.mxu0 0
  %617 = vmatprep.subr.bf16.mxu0 0
  %618 = vmatpush1.bf16.msra.mxu0 0
  %619 = vmatprep.subr.bf16.mxu0 0
  %620 = vmatpush1.bf16.msra.mxu0 0
  %621 = vmatprep.subr.bf16.mxu0 0
  %622 = vmatpush1.bf16.msra.mxu0 0
  %623 = vmatprep.subr.bf16.mxu0 0
  %624 = vmatpush1.bf16.msra.mxu0 0
  %625 = vmatprep.subr.bf16.mxu0 0
  %626 = vmatpush1.bf16.msra.mxu0 0
  %627 = vmatprep.subr.bf16.mxu0 0
  %628 = vmatpush1.bf16.msra.mxu0 0
  %629 = vmatprep.subr.bf16.mxu0 0
  %630 = vmatpush1.bf16.msra.mxu0 0
  %631 = vmatprep.mubr.bf16.mxu0 0
  %632 = vmatmul.mubr.bf16.gmra.mrb[0].mxu0 %v597
  %v633 = vpop.f32.mrb[0].mxu0
  %v634 = vadd.f32 %v594, %v633
  %v635 = vpop.f32.mrb[0].mxu0
  %v636 = vpop.f32.mrb[0].mxu0
  %v637 = vpop.f32.mrb[0].mxu0
  %638 = vdwg.mxu0
  %639 = vmatprep.subr.bf16.mxu0 0
  %640 = vmatpush1.bf16.msra.mxu0 %v463
  %641 = vmatprep.subr.bf16.mxu0 0
  %642 = vmatpush1.bf16.msra.mxu0 0
  %643 = vmatprep.subr.bf16.mxu0 0
  %644 = vmatpush1.bf16.msra.mxu0 0
  %645 = vmatprep.subr.bf16.mxu0 0
  %646 = vmatpush1.bf16.msra.mxu0 0
  %647 = vmatprep.subr.bf16.mxu0 0
  %648 = vmatpush1.bf16.msra.mxu0 0
  %649 = vmatprep.subr.bf16.mxu0 0
  %650 = vmatpush1.bf16.msra.mxu0 0
  %651 = vmatprep.subr.bf16.mxu0 0
  %652 = vmatpush1.bf16.msra.mxu0 0
  %653 = vmatprep.subr.bf16.mxu0 0
  %654 = vmatpush1.bf16.msra.mxu0 0
  %655 = vmatprep.subr.bf16.mxu0 0
  %656 = vmatpush1.bf16.msra.mxu0 0
  %657 = vmatprep.subr.bf16.mxu0 0
  %658 = vmatpush1.bf16.msra.mxu0 0
  %659 = vmatprep.subr.bf16.mxu0 0
  %660 = vmatpush1.bf16.msra.mxu0 0
  %661 = vmatprep.subr.bf16.mxu0 0
  %662 = vmatpush1.bf16.msra.mxu0 0
  %663 = vmatprep.subr.bf16.mxu0 0
  %664 = vmatpush1.bf16.msra.mxu0 0
  %665 = vmatprep.subr.bf16.mxu0 0
  %666 = vmatpush1.bf16.msra.mxu0 0
  %667 = vmatprep.subr.bf16.mxu0 0
  %668 = vmatpush1.bf16.msra.mxu0 0
  %669 = vmatprep.subr.bf16.mxu0 0
  %670 = vmatpush1.bf16.msra.mxu0 0
  %671 = vmatprep.mubr.bf16.mxu0 0
  %672 = vmatmul.mubr.bf16.gmra.mrb[0].mxu0 %v597
  %v673 = vpop.f32.mrb[0].mxu0
  %v674 = vadd.f32 %v594, %v673
  %v675 = vpop.f32.mrb[0].mxu0
  %v676 = vpop.f32.mrb[0].mxu0
  %v677 = vpop.f32.mrb[0].mxu0
  %678 = vdwg.mxu0
  %679 = vmatprep.subr.bf16.mxu0 0
  %680 = vmatpush1.bf16.msra.mxu0 %v506
  %681 = vmatprep.subr.bf16.mxu0 0
  %682 = vmatpush1.bf16.msra.mxu0 0
  %683 = vmatprep.subr.bf16.mxu0 0
  %684 = vmatpush1.bf16.msra.mxu0 0
  %685 = vmatprep.subr.bf16.mxu0 0
  %686 = vmatpush1.bf16.msra.mxu0 0
  %687 = vmatprep.subr.bf16.mxu0 0
  %688 = vmatpush1.bf16.msra.mxu0 0
  %689 = vmatprep.subr.bf16.mxu0 0
  %690 = vmatpush1.bf16.msra.mxu0 0
  %691 = vmatprep.subr.bf16.mxu0 0
  %692 = vmatpush1.bf16.msra.mxu0 0
  %693 = vmatprep.subr.bf16.mxu0 0
  %694 = vmatpush1.bf16.msra.mxu0 0
  %695 = vmatprep.subr.bf16.mxu0 0
  %696 = vmatpush1.bf16.msra.mxu0 0
  %697 = vmatprep.subr.bf16.mxu0 0
  %698 = vmatpush1.bf16.msra.mxu0 0
  %699 = vmatprep.subr.bf16.mxu0 0
  %700 = vmatpush1.bf16.msra.mxu0 0
  %701 = vmatprep.subr.bf16.mxu0 0
  %702 = vmatpush1.bf16.msra.mxu0 0
  %703 = vmatprep.subr.bf16.mxu0 0
  %704 = vmatpush1.bf16.msra.mxu0 0
  %705 = vmatprep.subr.bf16.mxu0 0
  %706 = vmatpush1.bf16.msra.mxu0 0
  %707 = vmatprep.subr.bf16.mxu0 0
  %708 = vmatpush1.bf16.msra.mxu0 0
  %709 = vmatprep.subr.bf16.mxu0 0
  %710 = vmatpush1.bf16.msra.mxu0 0
  %711 = vmatprep.mubr.bf16.mxu0 0
  %712 = vmatmul.mubr.bf16.gmra.mrb[0].mxu0 %v597
  %v713 = vpop.f32.mrb[0].mxu0
  %v714 = vadd.f32 %v594, %v713
  %v715 = vpop.f32.mrb[0].mxu0
  %v716 = vpop.f32.mrb[0].mxu0
  %v717 = vpop.f32.mrb[0].mxu0
  %718 = vdwg.mxu0
  %719 = vmatprep.subr.bf16.mxu0 0
  %720 = vmatpush1.bf16.msra.mxu0 %v549
  %721 = vmatprep.subr.bf16.mxu0 0
  %722 = vmatpush1.bf16.msra.mxu0 0
  %723 = vmatprep.subr.bf16.mxu0 0
  %724 = vmatpush1.bf16.msra.mxu0 0
  %725 = vmatprep.subr.bf16.mxu0 0
  %726 = vmatpush1.bf16.msra.mxu0 0
  %727 = vmatprep.subr.bf16.mxu0 0
  %728 = vmatpush1.bf16.msra.mxu0 0
  %729 = vmatprep.subr.bf16.mxu0 0
  %730 = vmatpush1.bf16.msra.mxu0 0
  %731 = vmatprep.subr.bf16.mxu0 0
  %732 = vmatpush1.bf16.msra.mxu0 0
  %733 = vmatprep.subr.bf16.mxu0 0
  %734 = vmatpush1.bf16.msra.mxu0 0
  %735 = vmatprep.subr.bf16.mxu0 0
  %736 = vmatpush1.bf16.msra.mxu0 0
  %737 = vmatprep.subr.bf16.mxu0 0
  %738 = vmatpush1.bf16.msra.mxu0 0
  %739 = vmatprep.subr.bf16.mxu0 0
  %740 = vmatpush1.bf16.msra.mxu0 0
  %741 = vmatprep.subr.bf16.mxu0 0
  %742 = vmatpush1.bf16.msra.mxu0 0
  %743 = vmatprep.subr.bf16.mxu0 0
  %744 = vmatpush1.bf16.msra.mxu0 0
  %745 = vmatprep.subr.bf16.mxu0 0
  %746 = vmatpush1.bf16.msra.mxu0 0
  %747 = vmatprep.subr.bf16.mxu0 0
  %748 = vmatpush1.bf16.msra.mxu0 0
  %749 = vmatprep.subr.bf16.mxu0 0
  %750 = vmatpush1.bf16.msra.mxu0 0
  %751 = vmatprep.mubr.bf16.mxu0 0
  %752 = vmatmul.mubr.bf16.gmra.mrb[0].mxu0 %v597
  %v753 = vpop.f32.mrb[0].mxu0
  %v754 = vadd.f32 %v594, %v753
  %v755 = vpop.f32.mrb[0].mxu0
  %v756 = vpop.f32.mrb[0].mxu0
  %v757 = vpop.f32.mrb[0].mxu0
  %758 = vdwg.mxu0
  %v759 = vadd.f32 %v333, %v388
  %v760 = vadd.f32 %v334, %v388
  %v761 = vadd.f32 %v335, %v388
  %v762 = vadd.f32 %v336, %v388
  %vm763 = vcmp.gt.f32.partialorder %v759, 0.0
  %vm764 = vcmp.gt.f32.partialorder %v760, 0.0
  %vm765 = vcmp.gt.f32.partialorder %v761, 0.0
  %vm766 = vcmp.gt.f32.partialorder %v762, 0.0
  %v767 = vmul.f32 %v759, 0.1
  %v768 = vmul.f32 %v760, 0.1
  %v769 = vmul.f32 %v761, 0.1
  %v770 = vmul.f32 %v762, 0.1
  %v771 = vsel %vm763, %v759, %v767
  %v772 = vsel %vm764, %v760, %v768
  %v773 = vsel %vm765, %v761, %v769
  %v774 = vsel %vm766, %v762, %v770
  %v775 = vmax.f32 %v771, %v772
  %v776 = vmax.f32 %v773, %v774
  %v777 = vmax.f32 %v775, %v776
  %v778 = vpack.c.bf16 %v777, %v777
  %780 = vset.pattern.permute.xlu0 0
  %781 = vperm.xlu0 %780, %v54
  %v782 = vpop.permute.xlu0 %781
  %v785 = vsel %vm342, %v45, 0
  %v788 = vsel %vm346, %v778, 0
  %790 = vmatprep.subr.bf16.mxu0 0
  %791 = vmatpush1.bf16.msra.mxu0 %v788
  %792 = vmatprep.subr.bf16.mxu0 0
  %793 = vmatpush1.bf16.msra.mxu0 0
  %794 = vmatprep.subr.bf16.mxu0 0
  %795 = vmatpush1.bf16.msra.mxu0 0
  %796 = vmatprep.subr.bf16.mxu0 0
  %797 = vmatpush1.bf16.msra.mxu0 0
  %798 = vmatprep.subr.bf16.mxu0 0
  %799 = vmatpush1.bf16.msra.mxu0 0
  %800 = vmatprep.subr.bf16.mxu0 0
  %801 = vmatpush1.bf16.msra.mxu0 0
  %802 = vmatprep.subr.bf16.mxu0 0
  %803 = vmatpush1.bf16.msra.mxu0 0
  %804 = vmatprep.subr.bf16.mxu0 0
  %805 = vmatpush1.bf16.msra.mxu0 0
  %806 = vmatprep.subr.bf16.mxu0 0
  %807 = vmatpush1.bf16.msra.mxu0 0
  %808 = vmatprep.subr.bf16.mxu0 0
  %809 = vmatpush1.bf16.msra.mxu0 0
  %810 = vmatprep.subr.bf16.mxu0 0
  %811 = vmatpush1.bf16.msra.mxu0 0
  %812 = vmatprep.subr.bf16.mxu0 0
  %813 = vmatpush1.bf16.msra.mxu0 0
  %814 = vmatprep.subr.bf16.mxu0 0
  %815 = vmatpush1.bf16.msra.mxu0 0
  %816 = vmatprep.subr.bf16.mxu0 0
  %817 = vmatpush1.bf16.msra.mxu0 0
  %818 = vmatprep.subr.bf16.mxu0 0
  %819 = vmatpush1.bf16.msra.mxu0 0
  %820 = vmatprep.subr.bf16.mxu0 0
  %821 = vmatpush1.bf16.msra.mxu0 0
  %822 = vmatprep.mubr.bf16.mxu0 0
  %823 = vmatmul.mubr.bf16.gmra.mrb[0].mxu0 %v785
  %v824 = vpop.f32.mrb[0].mxu0
  %v825 = vadd.f32 %v782, %v824
  %v826 = vpop.f32.mrb[0].mxu0
  %v827 = vpop.f32.mrb[0].mxu0
  %v828 = vpop.f32.mrb[0].mxu0
  %829 = vdwg.mxu0
  %831 = vset.pattern.permute.xlu0 0
  %832 = vperm.xlu0 %831, %v55
  %v833 = vpop.permute.xlu0 %832
  %v836 = vsel %vm342, %v46, 0
  %838 = vmatprep.subr.bf16.mxu0 0
  %839 = vmatpush1.bf16.msra.mxu0 %v788
  %840 = vmatprep.subr.bf16.mxu0 0
  %841 = vmatpush1.bf16.msra.mxu0 0
  %842 = vmatprep.subr.bf16.mxu0 0
  %843 = vmatpush1.bf16.msra.mxu0 0
  %844 = vmatprep.subr.bf16.mxu0 0
  %845 = vmatpush1.bf16.msra.mxu0 0
  %846 = vmatprep.subr.bf16.mxu0 0
  %847 = vmatpush1.bf16.msra.mxu0 0
  %848 = vmatprep.subr.bf16.mxu0 0
  %849 = vmatpush1.bf16.msra.mxu0 0
  %850 = vmatprep.subr.bf16.mxu0 0
  %851 = vmatpush1.bf16.msra.mxu0 0
  %852 = vmatprep.subr.bf16.mxu0 0
  %853 = vmatpush1.bf16.msra.mxu0 0
  %854 = vmatprep.subr.bf16.mxu0 0
  %855 = vmatpush1.bf16.msra.mxu0 0
  %856 = vmatprep.subr.bf16.mxu0 0
  %857 = vmatpush1.bf16.msra.mxu0 0
  %858 = vmatprep.subr.bf16.mxu0 0
  %859 = vmatpush1.bf16.msra.mxu0 0
  %860 = vmatprep.subr.bf16.mxu0 0
  %861 = vmatpush1.bf16.msra.mxu0 0
  %862 = vmatprep.subr.bf16.mxu0 0
  %863 = vmatpush1.bf16.msra.mxu0 0
  %864 = vmatprep.subr.bf16.mxu0 0
  %865 = vmatpush1.bf16.msra.mxu0 0
  %866 = vmatprep.subr.bf16.mxu0 0
  %867 = vmatpush1.bf16.msra.mxu0 0
  %868 = vmatprep.subr.bf16.mxu0 0
  %869 = vmatpush1.bf16.msra.mxu0 0
  %870 = vmatprep.mubr.bf16.mxu0 0
  %871 = vmatmul.mubr.bf16.gmra.mrb[0].mxu0 %v836
  %v872 = vpop.f32.mrb[0].mxu0
  %v873 = vadd.f32 %v833, %v872
  %v874 = vpop.f32.mrb[0].mxu0
  %v875 = vpop.f32.mrb[0].mxu0
  %v876 = vpop.f32.mrb[0].mxu0
  %877 = vdwg.mxu0
  %v878 = vmul.f32 %v825, %v457
  %v879 = vmul.f32 %v825, %v500
  %v880 = vmul.f32 %v825, %v543
  %v881 = vmul.f32 %v825, %v586
  %v882 = vxor.u32 %v878, 2147483648
  %v883 = vxor.u32 %v879, 2147483648
  %v884 = vxor.u32 %v880, 2147483648
  %v885 = vxor.u32 %v881, 2147483648
  %v886 = vmul.f32 %v882, 1.442695
  %v887 = vpow.pop %v886
  %v888 = vmul.f32 %v883, 1.442695
  %v889 = vpow.pop %v888
  %v890 = vmul.f32 %v884, 1.442695
  %v891 = vpow.pop %v890
  %v892 = vmul.f32 %v885, 1.442695
  %v893 = vpow.pop %v892
  %v894 = vadd.f32 %v887, 1.0
  %v895 = vadd.f32 %v889, 1.0
  %v896 = vadd.f32 %v891, 1.0
  %v897 = vadd.f32 %v893, 1.0
  %v898 = vrcp.pop %v894
  %v899 = vmul.f32 1.0, %v898
  %v900 = vrcp.pop %v895
  %v901 = vmul.f32 1.0, %v900
  %v902 = vrcp.pop %v896
  %v903 = vmul.f32 1.0, %v902
  %v904 = vrcp.pop %v897
  %v905 = vmul.f32 1.0, %v904
  %v906 = vmul.f32 %v873, %v634
  %v907 = vmul.f32 %v873, %v674
  %v908 = vmul.f32 %v873, %v714
  %v909 = vmul.f32 %v873, %v754
  %v910 = vxor.u32 %v906, 2147483648
  %v911 = vxor.u32 %v907, 2147483648
  %v912 = vxor.u32 %v908, 2147483648
  %v913 = vxor.u32 %v909, 2147483648
  %v914 = vmul.f32 %v910, 1.442695
  %v915 = vpow.pop %v914
  %v916 = vmul.f32 %v911, 1.442695
  %v917 = vpow.pop %v916
  %v918 = vmul.f32 %v912, 1.442695
  %v919 = vpow.pop %v918
  %v920 = vmul.f32 %v913, 1.442695
  %v921 = vpow.pop %v920
  %v922 = vadd.f32 %v915, 1.0
  %v923 = vadd.f32 %v917, 1.0
  %v924 = vadd.f32 %v919, 1.0
  %v925 = vadd.f32 %v921, 1.0
  %v926 = vrcp.pop %v922
  %v927 = vmul.f32 1.0, %v926
  %v928 = vrcp.pop %v923
  %v929 = vmul.f32 1.0, %v928
  %v930 = vrcp.pop %v924
  %v931 = vmul.f32 1.0, %v930
  %v932 = vrcp.pop %v925
  %v933 = vmul.f32 1.0, %v932
  %v934 = vmul.f32 %v927, %v58
  %v935 = vmul.f32 %v929, %v58
  %v936 = vmul.f32 %v931, %v58
  %v937 = vmul.f32 %v933, %v58
  %v938 = vpack.c.bf16 %v934, %v934
  %v939 = vpack.c.bf16 %v935, %v935
  %v940 = vpack.c.bf16 %v936, %v936
  %v941 = vpack.c.bf16 %v937, %v937
  %v943 = vsel %vm342, %v47, 0
  %v946 = vsel %vm346, %v938, 0
  %948 = vmatprep.subr.bf16.mxu0 0
  %949 = vmatpush1.bf16.msra.mxu0 %v946
  %950 = vmatprep.subr.bf16.mxu0 0
  %951 = vmatpush1.bf16.msra.mxu0 0
  %952 = vmatprep.subr.bf16.mxu0 0
  %953 = vmatpush1.bf16.msra.mxu0 0
  %954 = vmatprep.subr.bf16.mxu0 0
  %955 = vmatpush1.bf16.msra.mxu0 0
  %956 = vmatprep.subr.bf16.mxu0 0
  %957 = vmatpush1.bf16.msra.mxu0 0
  %958 = vmatprep.subr.bf16.mxu0 0
  %959 = vmatpush1.bf16.msra.mxu0 0
  %960 = vmatprep.subr.bf16.mxu0 0
  %961 = vmatpush1.bf16.msra.mxu0 0
  %962 = vmatprep.subr.bf16.mxu0 0
  %963 = vmatpush1.bf16.msra.mxu0 0
  %964 = vmatprep.subr.bf16.mxu0 0
  %965 = vmatpush1.bf16.msra.mxu0 0
  %966 = vmatprep.subr.bf16.mxu0 0
  %967 = vmatpush1.bf16.msra.mxu0 0
  %968 = vmatprep.subr.bf16.mxu0 0
  %969 = vmatpush1.bf16.msra.mxu0 0
  %970 = vmatprep.subr.bf16.mxu0 0
  %971 = vmatpush1.bf16.msra.mxu0 0
  %972 = vmatprep.subr.bf16.mxu0 0
  %973 = vmatpush1.bf16.msra.mxu0 0
  %974 = vmatprep.subr.bf16.mxu0 0
  %975 = vmatpush1.bf16.msra.mxu0 0
  %976 = vmatprep.subr.bf16.mxu0 0
  %977 = vmatpush1.bf16.msra.mxu0 0
  %978 = vmatprep.subr.bf16.mxu0 0
  %979 = vmatpush1.bf16.msra.mxu0 0
  %980 = vmatprep.mubr.bf16.mxu0 0
  %981 = vmatmul.mubr.bf16.gmra.mrb[0].mxu0 %v943
  %v982 = vpop.f32.mrb[0].mxu0
  %v983 = vadd.f32 0.0, %v982
  %v984 = vpop.f32.mrb[0].mxu0
  %v985 = vpop.f32.mrb[0].mxu0
  %v986 = vpop.f32.mrb[0].mxu0
  %987 = vdwg.mxu0
  %v989 = vsel %vm346, %v939, 0
  %991 = vmatprep.subr.bf16.mxu0 0
  %992 = vmatpush1.bf16.msra.mxu0 %v989
  %993 = vmatprep.subr.bf16.mxu0 0
  %994 = vmatpush1.bf16.msra.mxu0 0
  %995 = vmatprep.subr.bf16.mxu0 0
  %996 = vmatpush1.bf16.msra.mxu0 0
  %997 = vmatprep.subr.bf16.mxu0 0
  %998 = vmatpush1.bf16.msra.mxu0 0
  %999 = vmatprep.subr.bf16.mxu0 0
  %1000 = vmatpush1.bf16.msra.mxu0 0
  %1001 = vmatprep.subr.bf16.mxu0 0
  %1002 = vmatpush1.bf16.msra.mxu0 0
  %1003 = vmatprep.subr.bf16.mxu0 0
  %1004 = vmatpush1.bf16.msra.mxu0 0
  %1005 = vmatprep.subr.bf16.mxu0 0
  %1006 = vmatpush1.bf16.msra.mxu0 0
  %1007 = vmatprep.subr.bf16.mxu0 0
  %1008 = vmatpush1.bf16.msra.mxu0 0
  %1009 = vmatprep.subr.bf16.mxu0 0
  %1010 = vmatpush1.bf16.msra.mxu0 0
  %1011 = vmatprep.subr.bf16.mxu0 0
  %1012 = vmatpush1.bf16.msra.mxu0 0
  %1013 = vmatprep.subr.bf16.mxu0 0
  %1014 = vmatpush1.bf16.msra.mxu0 0
  %1015 = vmatprep.subr.bf16.mxu0 0
  %1016 = vmatpush1.bf16.msra.mxu0 0
  %1017 = vmatprep.subr.bf16.mxu0 0
  %1018 = vmatpush1.bf16.msra.mxu0 0
  %1019 = vmatprep.subr.bf16.mxu0 0
  %1020 = vmatpush1.bf16.msra.mxu0 0
  %1021 = vmatprep.subr.bf16.mxu0 0
  %1022 = vmatpush1.bf16.msra.mxu0 0
  %1023 = vmatprep.mubr.bf16.mxu0 0
  %1024 = vmatmul.mubr.bf16.gmra.mrb[0].mxu0 %v943
  %v1025 = vpop.f32.mrb[0].mxu0
  %v1026 = vadd.f32 0.0, %v1025
  %v1027 = vpop.f32.mrb[0].mxu0
  %v1028 = vpop.f32.mrb[0].mxu0
  %v1029 = vpop.f32.mrb[0].mxu0
  %1030 = vdwg.mxu0
  %v1032 = vsel %vm346, %v940, 0
  %1034 = vmatprep.subr.bf16.mxu0 0
  %1035 = vmatpush1.bf16.msra.mxu0 %v1032
  %1036 = vmatprep.subr.bf16.mxu0 0
  %1037 = vmatpush1.bf16.msra.mxu0 0
  %1038 = vmatprep.subr.bf16.mxu0 0
  %1039 = vmatpush1.bf16.msra.mxu0 0
  %1040 = vmatprep.subr.bf16.mxu0 0
  %1041 = vmatpush1.bf16.msra.mxu0 0
  %1042 = vmatprep.subr.bf16.mxu0 0
  %1043 = vmatpush1.bf16.msra.mxu0 0
  %1044 = vmatprep.subr.bf16.mxu0 0
  %1045 = vmatpush1.bf16.msra.mxu0 0
  %1046 = vmatprep.subr.bf16.mxu0 0
  %1047 = vmatpush1.bf16.msra.mxu0 0
  %1048 = vmatprep.subr.bf16.mxu0 0
  %1049 = vmatpush1.bf16.msra.mxu0 0
  %1050 = vmatprep.subr.bf16.mxu0 0
  %1051 = vmatpush1.bf16.msra.mxu0 0
  %1052 = vmatprep.subr.bf16.mxu0 0
  %1053 = vmatpush1.bf16.msra.mxu0 0
  %1054 = vmatprep.subr.bf16.mxu0 0
  %1055 = vmatpush1.bf16.msra.mxu0 0
  %1056 = vmatprep.subr.bf16.mxu0 0
  %1057 = vmatpush1.bf16.msra.mxu0 0
  %1058 = vmatprep.subr.bf16.mxu0 0
  %1059 = vmatpush1.bf16.msra.mxu0 0
  %1060 = vmatprep.subr.bf16.mxu0 0
  %1061 = vmatpush1.bf16.msra.mxu0 0
  %1062 = vmatprep.subr.bf16.mxu0 0
  %1063 = vmatpush1.bf16.msra.mxu0 0
  %1064 = vmatprep.subr.bf16.mxu0 0
  %1065 = vmatpush1.bf16.msra.mxu0 0
  %1066 = vmatprep.mubr.bf16.mxu0 0
  %1067 = vmatmul.mubr.bf16.gmra.mrb[0].mxu0 %v943
  %v1068 = vpop.f32.mrb[0].mxu0
  %v1069 = vadd.f32 0.0, %v1068
  %v1070 = vpop.f32.mrb[0].mxu0
  %v1071 = vpop.f32.mrb[0].mxu0
  %v1072 = vpop.f32.mrb[0].mxu0
  %1073 = vdwg.mxu0
  %v1075 = vsel %vm346, %v941, 0
  %1077 = vmatprep.subr.bf16.mxu0 0
  %1078 = vmatpush1.bf16.msra.mxu0 %v1075
  %1079 = vmatprep.subr.bf16.mxu0 0
  %1080 = vmatpush1.bf16.msra.mxu0 0
  %1081 = vmatprep.subr.bf16.mxu0 0
  %1082 = vmatpush1.bf16.msra.mxu0 0
  %1083 = vmatprep.subr.bf16.mxu0 0
  %1084 = vmatpush1.bf16.msra.mxu0 0
  %1085 = vmatprep.subr.bf16.mxu0 0
  %1086 = vmatpush1.bf16.msra.mxu0 0
  %1087 = vmatprep.subr.bf16.mxu0 0
  %1088 = vmatpush1.bf16.msra.mxu0 0
  %1089 = vmatprep.subr.bf16.mxu0 0
  %1090 = vmatpush1.bf16.msra.mxu0 0
  %1091 = vmatprep.subr.bf16.mxu0 0
  %1092 = vmatpush1.bf16.msra.mxu0 0
  %1093 = vmatprep.subr.bf16.mxu0 0
  %1094 = vmatpush1.bf16.msra.mxu0 0
  %1095 = vmatprep.subr.bf16.mxu0 0
  %1096 = vmatpush1.bf16.msra.mxu0 0
  %1097 = vmatprep.subr.bf16.mxu0 0
  %1098 = vmatpush1.bf16.msra.mxu0 0
  %1099 = vmatprep.subr.bf16.mxu0 0
  %1100 = vmatpush1.bf16.msra.mxu0 0
  %1101 = vmatprep.subr.bf16.mxu0 0
  %1102 = vmatpush1.bf16.msra.mxu0 0
  %1103 = vmatprep.subr.bf16.mxu0 0
  %1104 = vmatpush1.bf16.msra.mxu0 0
  %1105 = vmatprep.subr.bf16.mxu0 0
  %1106 = vmatpush1.bf16.msra.mxu0 0
  %1107 = vmatprep.subr.bf16.mxu0 0
  %1108 = vmatpush1.bf16.msra.mxu0 0
  %1109 = vmatprep.mubr.bf16.mxu0 0
  %1110 = vmatmul.mubr.bf16.gmra.mrb[0].mxu0 %v943
  %v1111 = vpop.f32.mrb[0].mxu0
  %v1112 = vadd.f32 0.0, %v1111
  %v1113 = vpop.f32.mrb[0].mxu0
  %v1114 = vpop.f32.mrb[0].mxu0
  %v1115 = vpop.f32.mrb[0].mxu0
  %1116 = vdwg.mxu0
  %v1117 = vmul.f32 %v134, %v899
  %v1118 = vmul.f32 %v194, %v901
  %v1119 = vmul.f32 %v254, %v903
  %v1120 = vmul.f32 %v314, %v905
  %v1121 = vadd.f32 %v1117, %v983
  %v1122 = vadd.f32 %v1118, %v1026
  %v1123 = vadd.f32 %v1119, %v1069
  %v1124 = vadd.f32 %v1120, %v1112
  %vm1125 = vcmp.gt.f32.partialorder %v1121, 0.0
  %vm1126 = vcmp.gt.f32.partialorder %v1122, 0.0
  %vm1127 = vcmp.gt.f32.partialorder %v1123, 0.0
  %vm1128 = vcmp.gt.f32.partialorder %v1124, 0.0
  %v1129 = vmul.f32 %v1121, 0.1
  %v1130 = vmul.f32 %v1122, 0.1
  %v1131 = vmul.f32 %v1123, 0.1
  %v1132 = vmul.f32 %v1124, 0.1
  %v1133 = vsel %vm1125, %v1121, %v1129
  %v1134 = vsel %vm1126, %v1122, %v1130
  %v1135 = vsel %vm1127, %v1123, %v1131
  %v1136 = vsel %vm1128, %v1124, %v1132
  %v1137 = vadd.f32 %v1133, %v59
  %v1138 = vadd.f32 %v1134, %v59
  %v1139 = vadd.f32 %v1135, %v59
  %v1140 = vadd.f32 %v1136, %v59
  %v1141 = vadd.f32 %v1137, %v1138
  %v1142 = vadd.f32 %v1141, %v1139
  %v1143 = vadd.f32 %v1142, %v1140
  %v1144 = vrcp.pop 4.0
  %v1145 = vmul.f32 %v1143, %v1144
  %v1146 = vpack.c.bf16 %v1137, %v1137
  %v1147 = vpack.c.bf16 %v1138, %v1138
  %v1148 = vpack.c.bf16 %v1139, %v1139
  %v1149 = vpack.c.bf16 %v1140, %v1140
  %1151 = vset.pattern.permute.xlu0 0
  %1152 = vperm.xlu0 %1151, %v56
  %v1153 = vpop.permute.xlu0 %1152
  %v1156 = vsel %vm342, %v48, 0
  %v1159 = vsel %vm346, %v1146, 0
  %1161 = vmatprep.subr.bf16.mxu0 0
  %1162 = vmatpush1.bf16.msra.mxu0 %v1159
  %1163 = vmatprep.subr.bf16.mxu0 0
  %1164 = vmatpush1.bf16.msra.mxu0 0
  %1165 = vmatprep.subr.bf16.mxu0 0
  %1166 = vmatpush1.bf16.msra.mxu0 0
  %1167 = vmatprep.subr.bf16.mxu0 0
  %1168 = vmatpush1.bf16.msra.mxu0 0
  %1169 = vmatprep.subr.bf16.mxu0 0
  %1170 = vmatpush1.bf16.msra.mxu0 0
  %1171 = vmatprep.subr.bf16.mxu0 0
  %1172 = vmatpush1.bf16.msra.mxu0 0
  %1173 = vmatprep.subr.bf16.mxu0 0
  %1174 = vmatpush1.bf16.msra.mxu0 0
  %1175 = vmatprep.subr.bf16.mxu0 0
  %1176 = vmatpush1.bf16.msra.mxu0 0
  %1177 = vmatprep.subr.bf16.mxu0 0
  %1178 = vmatpush1.bf16.msra.mxu0 0
  %1179 = vmatprep.subr.bf16.mxu0 0
  %1180 = vmatpush1.bf16.msra.mxu0 0
  %1181 = vmatprep.subr.bf16.mxu0 0
  %1182 = vmatpush1.bf16.msra.mxu0 0
  %1183 = vmatprep.subr.bf16.mxu0 0
  %1184 = vmatpush1.bf16.msra.mxu0 0
  %1185 = vmatprep.subr.bf16.mxu0 0
  %1186 = vmatpush1.bf16.msra.mxu0 0
  %1187 = vmatprep.subr.bf16.mxu0 0
  %1188 = vmatpush1.bf16.msra.mxu0 0
  %1189 = vmatprep.subr.bf16.mxu0 0
  %1190 = vmatpush1.bf16.msra.mxu0 0
  %1191 = vmatprep.subr.bf16.mxu0 0
  %1192 = vmatpush1.bf16.msra.mxu0 0
  %1193 = vmatprep.mubr.bf16.mxu0 0
  %1194 = vmatmul.mubr.bf16.gmra.mrb[0].mxu0 %v1156
  %v1195 = vpop.f32.mrb[0].mxu0
  %v1196 = vadd.f32 %v1153, %v1195
  %v1197 = vpop.f32.mrb[0].mxu0
  %v1198 = vpop.f32.mrb[0].mxu0
  %v1199 = vpop.f32.mrb[0].mxu0
  %1200 = vdwg.mxu0
  %v1202 = vsel %vm346, %v1147, 0
  %1204 = vmatprep.subr.bf16.mxu0 0
  %1205 = vmatpush1.bf16.msra.mxu0 %v1202
  %1206 = vmatprep.subr.bf16.mxu0 0
  %1207 = vmatpush1.bf16.msra.mxu0 0
  %1208 = vmatprep.subr.bf16.mxu0 0
  %1209 = vmatpush1.bf16.msra.mxu0 0
  %1210 = vmatprep.subr.bf16.mxu0 0
  %1211 = vmatpush1.bf16.msra.mxu0 0
  %1212 = vmatprep.subr.bf16.mxu0 0
  %1213 = vmatpush1.bf16.msra.mxu0 0
  %1214 = vmatprep.subr.bf16.mxu0 0
  %1215 = vmatpush1.bf16.msra.mxu0 0
  %1216 = vmatprep.subr.bf16.mxu0 0
  %1217 = vmatpush1.bf16.msra.mxu0 0
  %1218 = vmatprep.subr.bf16.mxu0 0
  %1219 = vmatpush1.bf16.msra.mxu0 0
  %1220 = vmatprep.subr.bf16.mxu0 0
  %1221 = vmatpush1.bf16.msra.mxu0 0
  %1222 = vmatprep.subr.bf16.mxu0 0
  %1223 = vmatpush1.bf16.msra.mxu0 0
  %1224 = vmatprep.subr.bf16.mxu0 0
  %1225 = vmatpush1.bf16.msra.mxu0 0
  %1226 = vmatprep.subr.bf16.mxu0 0
  %1227 = vmatpush1.bf16.msra.mxu0 0
  %1228 = vmatprep.subr.bf16.mxu0 0
  %1229 = vmatpush1.bf16.msra.mxu0 0
  %1230 = vmatprep.subr.bf16.mxu0 0
  %1231 = vmatpush1.bf16.msra.mxu0 0
  %1232 = vmatprep.subr.bf16.mxu0 0
  %1233 = vmatpush1.bf16.msra.mxu0 0
  %1234 = vmatprep.subr.bf16.mxu0 0
  %1235 = vmatpush1.bf16.msra.mxu0 0
  %1236 = vmatprep.mubr.bf16.mxu0 0
  %1237 = vmatmul.mubr.bf16.gmra.mrb[0].mxu0 %v1156
  %v1238 = vpop.f32.mrb[0].mxu0
  %v1239 = vadd.f32 %v1153, %v1238
  %v1240 = vpop.f32.mrb[0].mxu0
  %v1241 = vpop.f32.mrb[0].mxu0
  %v1242 = vpop.f32.mrb[0].mxu0
  %1243 = vdwg.mxu0
  %v1245 = vsel %vm346, %v1148, 0
  %1247 = vmatprep.subr.bf16.mxu0 0
  %1248 = vmatpush1.bf16.msra.mxu0 %v1245
  %1249 = vmatprep.subr.bf16.mxu0 0
  %1250 = vmatpush1.bf16.msra.mxu0 0
  %1251 = vmatprep.subr.bf16.mxu0 0
  %1252 = vmatpush1.bf16.msra.mxu0 0
  %1253 = vmatprep.subr.bf16.mxu0 0
  %1254 = vmatpush1.bf16.msra.mxu0 0
  %1255 = vmatprep.subr.bf16.mxu0 0
  %1256 = vmatpush1.bf16.msra.mxu0 0
  %1257 = vmatprep.subr.bf16.mxu0 0
  %1258 = vmatpush1.bf16.msra.mxu0 0
  %1259 = vmatprep.subr.bf16.mxu0 0
  %1260 = vmatpush1.bf16.msra.mxu0 0
  %1261 = vmatprep.subr.bf16.mxu0 0
  %1262 = vmatpush1.bf16.msra.mxu0 0
  %1263 = vmatprep.subr.bf16.mxu0 0
  %1264 = vmatpush1.bf16.msra.mxu0 0
  %1265 = vmatprep.subr.bf16.mxu0 0
  %1266 = vmatpush1.bf16.msra.mxu0 0
  %1267 = vmatprep.subr.bf16.mxu0 0
  %1268 = vmatpush1.bf16.msra.mxu0 0
  %1269 = vmatprep.subr.bf16.mxu0 0
  %1270 = vmatpush1.bf16.msra.mxu0 0
  %1271 = vmatprep.subr.bf16.mxu0 0
  %1272 = vmatpush1.bf16.msra.mxu0 0
  %1273 = vmatprep.subr.bf16.mxu0 0
  %1274 = vmatpush1.bf16.msra.mxu0 0
  %1275 = vmatprep.subr.bf16.mxu0 0
  %1276 = vmatpush1.bf16.msra.mxu0 0
  %1277 = vmatprep.subr.bf16.mxu0 0
  %1278 = vmatpush1.bf16.msra.mxu0 0
  %1279 = vmatprep.mubr.bf16.mxu0 0
  %1280 = vmatmul.mubr.bf16.gmra.mrb[0].mxu0 %v1156
  %v1281 = vpop.f32.mrb[0].mxu0
  %v1282 = vadd.f32 %v1153, %v1281
  %v1283 = vpop.f32.mrb[0].mxu0
  %v1284 = vpop.f32.mrb[0].mxu0
  %v1285 = vpop.f32.mrb[0].mxu0
  %1286 = vdwg.mxu0
  %v1288 = vsel %vm346, %v1149, 0
  %1290 = vmatprep.subr.bf16.mxu0 0
  %1291 = vmatpush1.bf16.msra.mxu0 %v1288
  %1292 = vmatprep.subr.bf16.mxu0 0
  %1293 = vmatpush1.bf16.msra.mxu0 0
  %1294 = vmatprep.subr.bf16.mxu0 0
  %1295 = vmatpush1.bf16.msra.mxu0 0
  %1296 = vmatprep.subr.bf16.mxu0 0
  %1297 = vmatpush1.bf16.msra.mxu0 0
  %1298 = vmatprep.subr.bf16.mxu0 0
  %1299 = vmatpush1.bf16.msra.mxu0 0
  %1300 = vmatprep.subr.bf16.mxu0 0
  %1301 = vmatpush1.bf16.msra.mxu0 0
  %1302 = vmatprep.subr.bf16.mxu0 0
  %1303 = vmatpush1.bf16.msra.mxu0 0
  %1304 = vmatprep.subr.bf16.mxu0 0
  %1305 = vmatpush1.bf16.msra.mxu0 0
  %1306 = vmatprep.subr.bf16.mxu0 0
  %1307 = vmatpush1.bf16.msra.mxu0 0
  %1308 = vmatprep.subr.bf16.mxu0 0
  %1309 = vmatpush1.bf16.msra.mxu0 0
  %1310 = vmatprep.subr.bf16.mxu0 0
  %1311 = vmatpush1.bf16.msra.mxu0 0
  %1312 = vmatprep.subr.bf16.mxu0 0
  %1313 = vmatpush1.bf16.msra.mxu0 0
  %1314 = vmatprep.subr.bf16.mxu0 0
  %1315 = vmatpush1.bf16.msra.mxu0 0
  %1316 = vmatprep.subr.bf16.mxu0 0
  %1317 = vmatpush1.bf16.msra.mxu0 0
  %1318 = vmatprep.subr.bf16.mxu0 0
  %1319 = vmatpush1.bf16.msra.mxu0 0
  %1320 = vmatprep.subr.bf16.mxu0 0
  %1321 = vmatpush1.bf16.msra.mxu0 0
  %1322 = vmatprep.mubr.bf16.mxu0 0
  %1323 = vmatmul.mubr.bf16.gmra.mrb[0].mxu0 %v1156
  %v1324 = vpop.f32.mrb[0].mxu0
  %v1325 = vadd.f32 %v1153, %v1324
  %v1326 = vpop.f32.mrb[0].mxu0
  %v1327 = vpop.f32.mrb[0].mxu0
  %v1328 = vpop.f32.mrb[0].mxu0
  %1329 = vdwg.mxu0
  %v1330 = vmul.f32 %v1196, %v899
  %v1331 = vmul.f32 %v1239, %v901
  %v1332 = vmul.f32 %v1282, %v903
  %v1333 = vmul.f32 %v1325, %v905
  %v1334 = vadd.f32 %v1330, %v983
  %v1335 = vadd.f32 %v1331, %v1026
  %v1336 = vadd.f32 %v1332, %v1069
  %v1337 = vadd.f32 %v1333, %v1112
  %vm1338 = vcmp.gt.f32.partialorder %v1334, 0.0
  %vm1339 = vcmp.gt.f32.partialorder %v1335, 0.0
  %vm1340 = vcmp.gt.f32.partialorder %v1336, 0.0
  %vm1341 = vcmp.gt.f32.partialorder %v1337, 0.0
  %v1342 = vmul.f32 %v1334, 0.1
  %v1343 = vmul.f32 %v1335, 0.1
  %v1344 = vmul.f32 %v1336, 0.1
  %v1345 = vmul.f32 %v1337, 0.1
  %v1346 = vsel %vm1338, %v1334, %v1342
  %v1347 = vsel %vm1339, %v1335, %v1343
  %v1348 = vsel %vm1340, %v1336, %v1344
  %v1349 = vsel %vm1341, %v1337, %v1345
  %v1350 = vmax.f32 %v1346, %v1347
  %v1351 = vmax.f32 %v1348, %v1349
  %v1352 = vmax.f32 %v1350, %v1351
  %v1353 = vpack.c.bf16 %v1352, %v1352
  %1355 = vset.pattern.permute.xlu0 0
  %1356 = vperm.xlu0 %1355, %v57
  %v1357 = vpop.permute.xlu0 %1356
  %v1360 = vsel %vm342, %v49, 0
  %v1363 = vsel %vm346, %v1353, 0
  %1365 = vmatprep.subr.bf16.mxu0 0
  %1366 = vmatpush1.bf16.msra.mxu0 %v1363
  %1367 = vmatprep.subr.bf16.mxu0 0
  %1368 = vmatpush1.bf16.msra.mxu0 0
  %1369 = vmatprep.subr.bf16.mxu0 0
  %1370 = vmatpush1.bf16.msra.mxu0 0
  %1371 = vmatprep.subr.bf16.mxu0 0
  %1372 = vmatpush1.bf16.msra.mxu0 0
  %1373 = vmatprep.subr.bf16.mxu0 0
  %1374 = vmatpush1.bf16.msra.mxu0 0
  %1375 = vmatprep.subr.bf16.mxu0 0
  %1376 = vmatpush1.bf16.msra.mxu0 0
  %1377 = vmatprep.subr.bf16.mxu0 0
  %1378 = vmatpush1.bf16.msra.mxu0 0
  %1379 = vmatprep.subr.bf16.mxu0 0
  %1380 = vmatpush1.bf16.msra.mxu0 0
  %1381 = vmatprep.subr.bf16.mxu0 0
  %1382 = vmatpush1.bf16.msra.mxu0 0
  %1383 = vmatprep.subr.bf16.mxu0 0
  %1384 = vmatpush1.bf16.msra.mxu0 0
  %1385 = vmatprep.subr.bf16.mxu0 0
  %1386 = vmatpush1.bf16.msra.mxu0 0
  %1387 = vmatprep.subr.bf16.mxu0 0
  %1388 = vmatpush1.bf16.msra.mxu0 0
  %1389 = vmatprep.subr.bf16.mxu0 0
  %1390 = vmatpush1.bf16.msra.mxu0 0
  %1391 = vmatprep.subr.bf16.mxu0 0
  %1392 = vmatpush1.bf16.msra.mxu0 0
  %1393 = vmatprep.subr.bf16.mxu0 0
  %1394 = vmatpush1.bf16.msra.mxu0 0
  %1395 = vmatprep.subr.bf16.mxu0 0
  %1396 = vmatpush1.bf16.msra.mxu0 0
  %1397 = vmatprep.mubr.bf16.mxu0 0
  %1398 = vmatmul.mubr.bf16.gmra.mrb[0].mxu0 %v1360
  %v1399 = vpop.f32.mrb[0].mxu0
  %v1400 = vadd.f32 %v1357, %v1399
  %v1401 = vpop.f32.mrb[0].mxu0
  %v1402 = vpop.f32.mrb[0].mxu0
  %v1403 = vpop.f32.mrb[0].mxu0
  %1404 = vdwg.mxu0
  %vm1405 = vcmp.gt.f32.partialorder %v1400, 0.0
  %v1406 = vmul.f32 %v1400, 0.1
  %v1407 = vsel %vm1405, %v1400, %v1406
  %v1408 = vadd.f32 %v1407, %v1145
  %1409 = vst [vmem:[%s6] sm:$0xff] %v1408
  // Predicated region
  $region26: #{gat_gcn_forward.1} parent=0 // pred_check
    _
  $region27: #{gat_gcn_forward.1} parent=0 // pred_check_branch
    %1411 = sbr.rel (0) target = $region29
  $region28: #{gat_gcn_forward.1} parent=0 // pred_region
    _
  $region29: #{gat_gcn_forward.1} parent=0 // pred_fallthru
    _
  // Predicated region
  $region30: #{gat_gcn_forward.1} parent=0 // pred_check
    _
  $region31: #{gat_gcn_forward.1} parent=0 // pred_check_branch
    %1413 = sbr.rel (0) target = $region33
  $region32: #{gat_gcn_forward.1} parent=0 // pred_region
    _
  $region33: #{gat_gcn_forward.1} parent=0 // pred_fallthru
    _

</llo_original>
